<compile_context>
chip_gen: v6e
topology: v6e:2x2x1
jax: 0.10.0
libtpu: 0.0.40
codegen_flags: <defaults>
</compile_context>

<pallas_src>
import functools

import jax
import jax.numpy as jnp
from jax import lax
from jax.experimental import pallas as pl
from jax.experimental.pallas import tpu as pltpu


def _round_up(x, m):
    return (x + m - 1) // m * m


def _pick_batch_tile(B, HW, Kp, Ep, budget_bytes=20 * 1024 * 1024):
    """Images per encoder grid step.  Budget keeps the per-step working set (double-buffered bf16
    im2col block + f32 conv activations) v7x-safe (64 MiB VMEM); v5e/v6e (128 MiB) could go
    larger, but at these shapes Bt saturates at the full batch anyway -> grid=(1,)."""
    per_img = HW * Kp * 2 * 2 + HW * Ep * 4
    bt = int(max(1, min(B, budget_bytes // max(per_img, 1))))
    if bt >= B:
        return B                          # whole batch in a single grid step
    bt = max(8, (bt // 8) * 8)            # keep the batch block sublane-aligned
    while bt > 8 and B % bt:
        bt -= 8
    return bt if B % bt == 0 else B       # fallback: single step with the whole batch


def encoder_kernel(col_ref, wc_ref, bc_ref, emb_ref, *, hw):
    """One grid step = Bt images.  Fused conv-as-im2col matmul (single lane-dense K contraction)
    + bias + ReLU, then a global average pool giving one embedding row per image."""
    bt = emb_ref.shape[0]
    kp = col_ref.shape[-1]
    ep = wc_ref.shape[-1]
    lhs = col_ref[...].reshape(bt * hw, kp)                        # bf16, K = Kp (128) contraction
    conv = jnp.dot(lhs, wc_ref[...], preferred_element_type=jnp.float32)
    conv = jnp.maximum(conv + bc_ref[...], 0.0)                    # [bt*hw, ep] f32, ReLU
    emb_ref[...] = jnp.mean(conv.reshape(bt, hw, ep), axis=1)      # global average pool -> [bt, ep]


def head_kernel(emb_ref, w1_ref, gamma_ref, beta_ref, w2_ref, b2_ref, out_ref):
    """SimCLRProjectionHead on the full batch (BatchNorm couples all rows):
    Linear(E->H, no bias) -> BatchNorm1d(batch stats) -> ReLU -> Linear(H->P, bias)."""
    h = jnp.dot(emb_ref[...].astype(jnp.bfloat16), w1_ref[...],
                preferred_element_type=jnp.float32)                # [B, Hp] f32
    mean = jnp.mean(h, axis=0, keepdims=True)
    diff = h - mean
    var = jnp.mean(diff * diff, axis=0, keepdims=True)             # biased variance (training mode)
    h = diff * lax.rsqrt(var + 1e-5)
    h = h * gamma_ref[...] + beta_ref[...]
    h = jnp.maximum(h, 0.0)
    out_ref[...] = jnp.dot(h.astype(jnp.bfloat16), w2_ref[...],
                           preferred_element_type=jnp.float32) + b2_ref[...]


def simclr_forward(x, params):
    """x: [B, C, H, W] float32 (NCHW, like the PyTorch module).  Returns [B, projection_dim] f32."""
    B, C, H, W = x.shape
    E = params["wconv"].shape[0]          # Conv2d weight (E, C, 3, 3)
    hidden = params["w1"].shape[0]        # Linear weight (hidden, E)
    proj = params["w2"].shape[0]          # Linear weight (proj, hidden)
    HW = H * W
    K = 9 * C

    Kp = _round_up(K, 128)
    Ep = _round_up(E, 128)
    Hp = _round_up(hidden, 128)
    Pp = _round_up(proj, 128)

    # ---- glue: NCHW -> tiny im2col slab [B, HW, Kp] (bf16, lane-dense contraction) ----
    xt = jnp.transpose(x, (0, 2, 3, 1))                                  # [B, H, W, C]
    xp = jnp.pad(xt, ((0, 0), (1, 1), (1, 1), (0, 0)))                   # [B, H+2, W+2, C]
    taps = [xp[:, di:di + H, dj:dj + W, :] for di in range(3) for dj in range(3)]
    col = jnp.concatenate(taps, axis=-1).reshape(B, HW, K)               # [B, HW, 9*C]
    col = jnp.pad(col, ((0, 0), (0, 0), (0, Kp - K))).astype(jnp.bfloat16)

    # conv weight (E, C, 3, 3) -> [Kp, Ep]; row index = (ki*3+kj)*C + c, matching the tap packing
    wc = jnp.transpose(params["wconv"], (2, 3, 1, 0)).reshape(K, E)
    wc = jnp.pad(wc, ((0, Kp - K), (0, Ep - E))).astype(jnp.bfloat16)
    bc = jnp.pad(params["bconv"], (0, Ep - E)).reshape(1, Ep).astype(jnp.float32)

    # projection head weights (torch layouts) -> padded, matmul-ready
    w1 = jnp.pad(params["w1"].T, ((0, Ep - E), (0, Hp - hidden))).astype(jnp.bfloat16)
    gamma = jnp.pad(params["gamma"], (0, Hp - hidden),
                    constant_values=1.0).reshape(1, Hp).astype(jnp.float32)
    beta = jnp.pad(params["beta"], (0, Hp - hidden)).reshape(1, Hp).astype(jnp.float32)
    w2 = jnp.pad(params["w2"].T, ((0, Hp - hidden), (0, Pp - proj))).astype(jnp.bfloat16)
    b2 = jnp.pad(params["b2"], (0, Pp - proj)).reshape(1, Pp).astype(jnp.float32)

    # ---- encoder call: fused im2col matmul + bias + ReLU + global average pool ----
    Bt = _pick_batch_tile(B, HW, Kp, Ep)
    n_steps = B // Bt

    enc_flops = 2 * B * HW * Kp * Ep
    enc_bytes = col.size * 2 + wc.size * 2 + bc.size * 4 + B * Ep * 4

    emb = pl.pallas_call(
        functools.partial(encoder_kernel, hw=HW),
        out_shape=jax.ShapeDtypeStruct((B, Ep), jnp.float32),
        grid_spec=pltpu.PrefetchScalarGridSpec(
            num_scalar_prefetch=0,
            grid=(n_steps,),                                              # (1,) at these shapes
            in_specs=[
                pl.BlockSpec((Bt, HW, Kp), lambda i: (i, 0, 0)),          # Bt images per step
                pl.BlockSpec((Kp, Ep), lambda i: (0, 0)),                 # conv weight (constant)
                pl.BlockSpec((1, Ep), lambda i: (0, 0)),                  # conv bias   (constant)
            ],
            out_specs=pl.BlockSpec((Bt, Ep), lambda i: (i, 0)),           # disjoint rows per step
        ),
        compiler_params=pltpu.CompilerParams(
            # each step writes its own embedding rows -> batch axis is truly parallel
            # (lets v7x shard encoder steps across its 2 TensorCores)
            dimension_semantics=("parallel",),
            vmem_limit_bytes=32 * 1024 * 1024,
        ),
        cost_estimate=pl.CostEstimate(flops=enc_flops, transcendentals=0,
                                      bytes_accessed=enc_bytes),
    )(col, wc, bc)

    # ---- head call: Linear -> BatchNorm1d (batch stats) -> ReLU -> Linear (whole batch) ----
    head_flops = 2 * B * Ep * Hp + 2 * B * Hp * Pp
    head_bytes = (emb.size * 4 + (w1.size + w2.size) * 2
                  + (gamma.size + beta.size + b2.size) * 4 + B * Pp * 4)

    out = pl.pallas_call(
        head_kernel,
        out_shape=jax.ShapeDtypeStruct((B, Pp), jnp.float32),
        compiler_params=pltpu.CompilerParams(vmem_limit_bytes=32 * 1024 * 1024),
        cost_estimate=pl.CostEstimate(flops=head_flops, transcendentals=Hp,
                                      bytes_accessed=head_bytes),
    )(emb, w1, gamma, beta, w2, b2)

    return out[:, :proj]


def init_params(key, C, embed_dim, hidden_dim, projection_dim):
    k1, k2, k3, k4, k5 = jax.random.split(key, 5)
    scale = 0.05
    return {
        # synthetic encoder: Conv2d(C, embed_dim, 3, padding=1), torch weight layout
        "wconv": scale * jax.random.normal(k1, (embed_dim, C, 3, 3), jnp.float32),
        "bconv": scale * jax.random.normal(k2, (embed_dim,), jnp.float32),
        # SimCLRProjectionHead, torch Linear weight layouts
        "w1": scale * jax.random.normal(k3, (hidden_dim, embed_dim), jnp.float32),   # bias=False
        "gamma": jnp.ones((hidden_dim,), jnp.float32),
        "beta": jnp.zeros((hidden_dim,), jnp.float32),
        "w2": scale * jax.random.normal(k4, (projection_dim, hidden_dim), jnp.float32),
        "b2": scale * jax.random.normal(k5, (projection_dim,), jnp.float32),
    }


if __name__ == "__main__":
    # small shapes consistent with the module's forward
    B, C, H, W = 4, 3, 16, 16
    embed_dim, hidden_dim, projection_dim = 32, 64, 32

    key = jax.random.PRNGKey(0)
    kx, kp = jax.random.split(key)
    x = jax.random.normal(kx, (B, C, H, W), jnp.float32)   # NCHW, like the PyTorch module
    params = init_params(kp, C, embed_dim, hidden_dim, projection_dim)

    fwd = jax.jit(simclr_forward)   # fuse the NCHW->im2col glue and output slice with the kernels
    z = fwd(x, params)
    jax.block_until_ready(z)
    assert z.shape == (B, projection_dim)
    assert bool(jnp.all(jnp.isfinite(z)))
    print("KERNEL_OK")
</pallas_src>

<mosaic_0001>
module attributes {stable_mosaic.version = 11 : i64} {
  func.func @encoder_kernel(%arg0: i32, %arg1: memref<4x256x128xbf16, #tpu.memory_space<vmem>>, %arg2: memref<128x128xbf16, #tpu.memory_space<vmem>>, %arg3: memref<1x128xf32, #tpu.memory_space<vmem>>, %arg4: memref<4x128xf32, #tpu.memory_space<vmem>>) attributes {dimension_semantics = [#tpu.dimension_semantics<parallel>], iteration_bounds = array<i64: 1>, scalar_prefetch = 0 : i64, scratch_operands = 0 : i64, tpu.core_type = #tpu.core_type<tc>, window_params = [{transform_indices = @transform_0, window_bounds = array<i64: 4, 256, 128>}, {pipeline_mode = #tpu.pipeline_mode<synchronous>, transform_indices = @transform_1, window_bounds = array<i64: 128, 128>}, {pipeline_mode = #tpu.pipeline_mode<synchronous>, transform_indices = @transform_2, window_bounds = array<i64: 1, 128>}, {transform_indices = @transform_3, window_bounds = array<i64: 4, 128>}]} {
    %c0 = arith.constant 0 : index
    %c0_0 = arith.constant 0 : index
    %c0_1 = arith.constant 0 : index
    %0 = vector.load %arg1[%c0, %c0_0, %c0_1] : memref<4x256x128xbf16, #tpu.memory_space<vmem>>, vector<4x256x128xbf16>
    %1 = vector.shape_cast %0 : vector<4x256x128xbf16> to vector<1024x128xbf16>
    %c0_2 = arith.constant 0 : index
    %c0_3 = arith.constant 0 : index
    %2 = vector.load %arg2[%c0_2, %c0_3] : memref<128x128xbf16, #tpu.memory_space<vmem>>, vector<128x128xbf16>
    %cst = arith.constant dense<0.000000e+00> : vector<1024x128xf32>
    %3 = tpu.matmul %1, %2, %cst {dimension_numbers = #tpu.dot_dimension_numbers<[1], [0], [0], [1], [0, 0, 1, 1], [], []>} : vector<1024x128xbf16>, vector<128x128xbf16>, vector<1024x128xf32> -> vector<1024x128xf32>
    %c0_4 = arith.constant 0 : index
    %c0_5 = arith.constant 0 : index
    %4 = vector.load %arg3[%c0_4, %c0_5] : memref<1x128xf32, #tpu.memory_space<vmem>>, vector<1x128xf32>
    %5 = vector.broadcast %4 : vector<1x128xf32> to vector<1024x128xf32>
    %6 = arith.addf %3, %5 : vector<1024x128xf32>
    %cst_6 = arith.constant 0.000000e+00 : f32
    %7 = vector.broadcast %cst_6 : f32 to vector<1024x128xf32>
    %8 = arith.maximumf %6, %7 : vector<1024x128xf32>
    %9 = vector.shape_cast %8 : vector<1024x128xf32> to vector<4x256x128xf32>
    %cst_7 = arith.constant dense<0.000000e+00> : vector<4x128xf32>
    %10 = vector.multi_reduction <add>, %9, %cst_7 [1] : vector<4x256x128xf32> to vector<4x128xf32>
    %cst_8 = arith.constant 2.560000e+02 : f32
    %11 = vector.broadcast %cst_8 : f32 to vector<4x128xf32>
    %12 = arith.divf %10, %11 : vector<4x128xf32>
    %c0_9 = arith.constant 0 : index
    %c0_10 = arith.constant 0 : index
    %13 = vector.load %arg4[%c0_9, %c0_10] : memref<4x128xf32, #tpu.memory_space<vmem>>, vector<4x128xf32>
    tpu.vector_store %arg4[%c0_9, %c0_10], %12 {strides = array<i32>} : memref<4x128xf32, #tpu.memory_space<vmem>>, vector<4x128xf32>,
    return
  }
  func.func @transform_0(%arg0: i32) -> (i32, i32, i32) {
    %c0_i32 = arith.constant 0 : i32
    %c0_i32_0 = arith.constant 0 : i32
    %c0_i32_1 = arith.constant 0 : i32
    return %arg0, %c0_i32, %c0_i32_0 : i32, i32, i32
  }
  func.func @transform_1(%arg0: i32) -> (i32, i32) {
    %c0_i32 = arith.constant 0 : i32
    %c0_i32_0 = arith.constant 0 : i32
    %c0_i32_1 = arith.constant 0 : i32
    return %c0_i32, %c0_i32_0 : i32, i32
  }
  func.func @transform_2(%arg0: i32) -> (i32, i32) {
    %c0_i32 = arith.constant 0 : i32
    %c0_i32_0 = arith.constant 0 : i32
    %c0_i32_1 = arith.constant 0 : i32
    return %c0_i32, %c0_i32_0 : i32, i32
  }
  func.func @transform_3(%arg0: i32) -> (i32, i32) {
    %c0_i32 = arith.constant 0 : i32
    %c0_i32_0 = arith.constant 0 : i32
    return %arg0, %c0_i32 : i32, i32
  }
}

module attributes {stable_mosaic.version = 11 : i64} {
  func.func @head_kernel(%arg0: memref<4x128xf32, #tpu.memory_space<vmem>>, %arg1: memref<128x128xbf16, #tpu.memory_space<vmem>>, %arg2: memref<1x128xf32, #tpu.memory_space<vmem>>, %arg3: memref<1x128xf32, #tpu.memory_space<vmem>>, %arg4: memref<128x128xbf16, #tpu.memory_space<vmem>>, %arg5: memref<1x128xf32, #tpu.memory_space<vmem>>, %arg6: memref<4x128xf32, #tpu.memory_space<vmem>>) attributes {dimension_semantics = [], scalar_prefetch = 0 : i64, scratch_operands = 0 : i64, tpu.core_type = #tpu.core_type<tc>} {
    %c0 = arith.constant 0 : index
    %c0_0 = arith.constant 0 : index
    %0 = vector.load %arg0[%c0, %c0_0] : memref<4x128xf32, #tpu.memory_space<vmem>>, vector<4x128xf32>
    %1 = arith.truncf %0 : vector<4x128xf32> to vector<4x128xbf16>
    %c0_1 = arith.constant 0 : index
    %c0_2 = arith.constant 0 : index
    %2 = vector.load %arg1[%c0_1, %c0_2] : memref<128x128xbf16, #tpu.memory_space<vmem>>, vector<128x128xbf16>
    %cst = arith.constant dense<0.000000e+00> : vector<4x128xf32>
    %3 = tpu.matmul %1, %2, %cst {dimension_numbers = #tpu.dot_dimension_numbers<[1], [0], [0], [1], [0, 0, 1, 1], [], []>} : vector<4x128xbf16>, vector<128x128xbf16>, vector<4x128xf32> -> vector<4x128xf32>
    %cst_3 = arith.constant dense<0.000000e+00> : vector<128xf32>
    %4 = vector.multi_reduction <add>, %3, %cst_3 [0] : vector<4x128xf32> to vector<128xf32>
    %5 = vector.shape_cast %4 : vector<128xf32> to vector<1x128xf32>
    %cst_4 = arith.constant 4.000000e+00 : f32
    %6 = vector.broadcast %cst_4 : f32 to vector<1x128xf32>
    %7 = arith.divf %5, %6 : vector<1x128xf32>
    %8 = vector.broadcast %7 : vector<1x128xf32> to vector<4x128xf32>
    %9 = arith.subf %3, %8 : vector<4x128xf32>
    %10 = arith.mulf %9, %9 : vector<4x128xf32>
    %cst_5 = arith.constant dense<0.000000e+00> : vector<128xf32>
    %11 = vector.multi_reduction <add>, %10, %cst_5 [0] : vector<4x128xf32> to vector<128xf32>
    %12 = vector.shape_cast %11 : vector<128xf32> to vector<1x128xf32>
    %cst_6 = arith.constant 4.000000e+00 : f32
    %13 = vector.broadcast %cst_6 : f32 to vector<1x128xf32>
    %14 = arith.divf %12, %13 : vector<1x128xf32>
    %cst_7 = arith.constant 9.99999974E-6 : f32
    %15 = vector.broadcast %cst_7 : f32 to vector<1x128xf32>
    %16 = arith.addf %14, %15 : vector<1x128xf32>
    %17 = math.rsqrt %16 : vector<1x128xf32>
    %18 = vector.broadcast %17 : vector<1x128xf32> to vector<4x128xf32>
    %19 = arith.mulf %9, %18 : vector<4x128xf32>
    %c0_8 = arith.constant 0 : index
    %c0_9 = arith.constant 0 : index
    %20 = vector.load %arg2[%c0_8, %c0_9] : memref<1x128xf32, #tpu.memory_space<vmem>>, vector<1x128xf32>
    %21 = vector.broadcast %20 : vector<1x128xf32> to vector<4x128xf32>
    %22 = arith.mulf %19, %21 : vector<4x128xf32>
    %c0_10 = arith.constant 0 : index
    %c0_11 = arith.constant 0 : index
    %23 = vector.load %arg3[%c0_10, %c0_11] : memref<1x128xf32, #tpu.memory_space<vmem>>, vector<1x128xf32>
    %24 = vector.broadcast %23 : vector<1x128xf32> to vector<4x128xf32>
    %25 = arith.addf %22, %24 : vector<4x128xf32>
    %cst_12 = arith.constant 0.000000e+00 : f32
    %26 = vector.broadcast %cst_12 : f32 to vector<4x128xf32>
    %27 = arith.maximumf %25, %26 : vector<4x128xf32>
    %28 = arith.truncf %27 : vector<4x128xf32> to vector<4x128xbf16>
    %c0_13 = arith.constant 0 : index
    %c0_14 = arith.constant 0 : index
    %29 = vector.load %arg4[%c0_13, %c0_14] : memref<128x128xbf16, #tpu.memory_space<vmem>>, vector<128x128xbf16>
    %cst_15 = arith.constant dense<0.000000e+00> : vector<4x128xf32>
    %30 = tpu.matmul %28, %29, %cst_15 {dimension_numbers = #tpu.dot_dimension_numbers<[1], [0], [0], [1], [0, 0, 1, 1], [], []>} : vector<4x128xbf16>, vector<128x128xbf16>, vector<4x128xf32> -> vector<4x128xf32>
    %c0_16 = arith.constant 0 : index
    %c0_17 = arith.constant 0 : index
    %31 = vector.load %arg5[%c0_16, %c0_17] : memref<1x128xf32, #tpu.memory_space<vmem>>, vector<1x128xf32>
    %32 = vector.broadcast %31 : vector<1x128xf32> to vector<4x128xf32>
    %33 = arith.addf %30, %32 : vector<4x128xf32>
    %c0_18 = arith.constant 0 : index
    %c0_19 = arith.constant 0 : index
    %34 = vector.load %arg6[%c0_18, %c0_19] : memref<4x128xf32, #tpu.memory_space<vmem>>, vector<4x128xf32>
    tpu.vector_store %arg6[%c0_18, %c0_19], %33 {strides = array<i32>} : memref<4x128xf32, #tpu.memory_space<vmem>>, vector<4x128xf32>,
    return
  }
}

</mosaic_0001>

<llo_original>
// kernel: simclr_forward.3
$region0: #{simclr_forward.3}
  #allocation0 [shape = 'u32[]', space=smem, size = 0x4, offset = 0x4, fixed_abs, tag = 'smem constant byte address 0x4 - core index']
  #allocation1 [shape = 'u32[144,128]{1,0:T(1,128)}', space=vmem, size = 0x12000, scoped, tag = 'internal scratch']
  %s0 = inlined_call_operand.vmem [shape: f32[4,128], index: 0, kind: input, shape index: {}]
  %s1 = inlined_call_operand.vmem [shape: bf16[128,128], index: 1, kind: input, shape index: {}]
  %s2 = inlined_call_operand.vmem [shape: f32[1,128], index: 2, kind: input, shape index: {}]
  %s3 = inlined_call_operand.vmem [shape: f32[1,128], index: 3, kind: input, shape index: {}]
  %s4 = inlined_call_operand.vmem [shape: bf16[128,128], index: 4, kind: input, shape index: {}]
  %s5 = inlined_call_operand.vmem [shape: f32[1,128], index: 5, kind: input, shape index: {}]
  %s6 = inlined_call_operand.hbm [shape: f32[4,128], index: 6, kind: output, shape index: {}]
  %s7 = sld [smem:[#allocation0]]
  $region34: #{simclr_forward.3} parent=0
    _
  %s9 = ssub.s32 1, %s7
  %s10 = scalar_select 0, %s9, %s7
  $region1: #{simclr_forward.3} parent=0
    #allocation2 [shape = 'u8[2048]{0}', space=vmem, size = 0x800, scoped, tag = 'output window, operand 0, single buffered']
    #allocation3 [shape = 's32[1]{0}', space=sflag, size = 0x4, scoped, tag = 'scoped memory for simclr_forward.3']
    %11 = vsyncpa [#allocation3], 0
    // Predicated region
    $region2: #{simclr_forward.3} parent=1 // pred_check
      _
    $region3: #{simclr_forward.3} parent=1 // pred_check_branch
      %13 = sbr.rel (0) target = $region5
    $region4: #{simclr_forward.3} parent=1 // pred_region
      _
    $region5: #{simclr_forward.3} parent=1 // pred_fallthru
      _
    // Predicated region
    $region6: #{simclr_forward.3} parent=1 // pred_check
      _
    $region7: #{simclr_forward.3} parent=1 // pred_check_branch
      %15 = sbr.rel (0) target = $region9
    $region8: #{simclr_forward.3} parent=1 // pred_region
      _
    $region9: #{simclr_forward.3} parent=1 // pred_fallthru
      _
    // Predicated region
    $region10: #{simclr_forward.3} parent=1 // pred_check
      _
    $region11: #{simclr_forward.3} parent=1 // pred_check_branch
      %17 = sbr.rel (0) target = $region13
    $region12: #{simclr_forward.3} parent=1 // pred_region
      _
    $region13: #{simclr_forward.3} parent=1 // pred_fallthru
      _
    // Predicated region
    $region14: #{simclr_forward.3} parent=1 // pred_check
      _
    $region15: #{simclr_forward.3} parent=1 // pred_check_branch
      %19 = sbr.rel (0) target = $region17
    $region16: #{simclr_forward.3} parent=1 // pred_region
      _
    $region17: #{simclr_forward.3} parent=1 // pred_fallthru
      _
    // Predicated region
    $region18: #{simclr_forward.3} parent=1 // pred_check
      _
    $region19: #{simclr_forward.3} parent=1 // pred_check_branch
      %21 = sbr.rel (0) target = $region21
    $region20: #{simclr_forward.3} parent=1 // pred_region
      _
    $region21: #{simclr_forward.3} parent=1 // pred_fallthru
      _
    // Predicated region
    $region22: #{simclr_forward.3} parent=1 // pred_check
      _
    $region23: #{simclr_forward.3} parent=1 // pred_check_branch
      %23 = sbr.rel (0) target = $region25
    $region24: #{simclr_forward.3} parent=1 // pred_region
      _
    $region25: #{simclr_forward.3} parent=1 // pred_fallthru
      _
    %v25 = vld [vmem:[%s0] sm:$0xf]
    %v26 = vpack.c.bf16 %v25, %v25
    %v27 = vld [vmem:[%s1] sm:$0xf]
    %v28 = vld [vmem:[%s1 + $0x4] sm:$0xf]
    %v29 = vld [vmem:[%s1 + $0x8] sm:$0xf]
    %v30 = vld [vmem:[%s1 + $0xc] sm:$0xf]
    %v31 = vld [vmem:[%s1 + $0x10] sm:$0xf]
    %v32 = vld [vmem:[%s1 + $0x14] sm:$0xf]
    %v33 = vld [vmem:[%s1 + $0x18] sm:$0xf]
    %v34 = vld [vmem:[%s1 + $0x1c] sm:$0xf]
    %v35 = vld [vmem:[%s1 + $0x20] sm:$0xf]
    %v36 = vld [vmem:[%s1 + $0x24] sm:$0xf]
    %v37 = vld [vmem:[%s1 + $0x28] sm:$0xf]
    %v38 = vld [vmem:[%s1 + $0x2c] sm:$0xf]
    %v39 = vld [vmem:[%s1 + $0x30] sm:$0xf]
    %v40 = vld [vmem:[%s1 + $0x34] sm:$0xf]
    %v41 = vld [vmem:[%s1 + $0x38] sm:$0xf]
    %v42 = vld [vmem:[%s1 + $0x3c] sm:$0xf]
    %v59 = vunpack.c.l.b16 %v27
    %v60 = vunpack.c.l.b16 %v28
    %v61 = vunpack.c.l.b16 %v29
    %v62 = vunpack.c.l.b16 %v30
    %v63 = vunpack.c.l.b16 %v31
    %v64 = vunpack.c.l.b16 %v32
    %v65 = vunpack.c.l.b16 %v33
    %v66 = vunpack.c.l.b16 %v34
    %v67 = vunpack.c.l.b16 %v35
    %v68 = vunpack.c.l.b16 %v36
    %v69 = vunpack.c.l.b16 %v37
    %v70 = vunpack.c.l.b16 %v38
    %v71 = vunpack.c.l.b16 %v39
    %v72 = vunpack.c.l.b16 %v40
    %v73 = vunpack.c.l.b16 %v41
    %v74 = vunpack.c.l.b16 %v42
    %v75 = vpack.c.b16 %v60, %v59
    %v76 = vpack.c.b16 %v62, %v61
    %v77 = vpack.c.b16 %v64, %v63
    %v78 = vpack.c.b16 %v66, %v65
    %v79 = vpack.c.b16 %v68, %v67
    %v80 = vpack.c.b16 %v70, %v69
    %v81 = vpack.c.b16 %v72, %v71
    %v82 = vpack.c.b16 %v74, %v73
    %91 = vmatprep.subr.bf16.mxu0 0
    %92 = vmatpush1.bf16.msra.mxu0 %v82
    %93 = vmatprep.subr.bf16.mxu0 0
    %94 = vmatpush1.bf16.msra.mxu0 %v81
    %95 = vmatprep.subr.bf16.mxu0 0
    %96 = vmatpush1.bf16.msra.mxu0 %v80
    %97 = vmatprep.subr.bf16.mxu0 0
    %98 = vmatpush1.bf16.msra.mxu0 %v79
    %99 = vmatprep.subr.bf16.mxu0 0
    %100 = vmatpush1.bf16.msra.mxu0 %v78
    %101 = vmatprep.subr.bf16.mxu0 0
    %102 = vmatpush1.bf16.msra.mxu0 %v77
    %103 = vmatprep.subr.bf16.mxu0 0
    %104 = vmatpush1.bf16.msra.mxu0 %v76
    %105 = vmatprep.subr.bf16.mxu0 0
    %106 = vmatpush1.bf16.msra.mxu0 %v75
    %107 = vmatprep.subr.bf16.mxu0 0
    %108 = vmatpush2.bf16.msra.mxu0 0
    %109 = vmatprep.subr.bf16.mxu0 0
    %110 = vmatpush2.bf16.msra.mxu0 0
    %111 = vmatprep.subr.bf16.mxu0 0
    %112 = vmatpush2.bf16.msra.mxu0 0
    %113 = vmatprep.subr.bf16.mxu0 0
    %114 = vmatpush2.bf16.msra.mxu0 0
    %115 = vmatprep.subr.bf16.mxu0 0
    %116 = vmatpush2.bf16.msra.mxu0 0
    %117 = vmatprep.subr.bf16.mxu0 0
    %118 = vmatpush2.bf16.msra.mxu0 0
    %119 = vmatprep.subr.bf16.mxu0 0
    %120 = vmatpush2.bf16.msra.mxu0 0
    %121 = vmatprep.subr.bf16.mxu0 0
    %122 = vmatpush2.bf16.msra.mxu0 0
    %123 = vmatprep.mubr.bf16.mxu0 0
    %124 = vmatmul.mubr.bf16.gmra.mxu0 %v26
    %v125 = vpop.f32.mrf.mxu0
    %v126 = vadd.f32 0.0, %v125
    %v127 = vpop.f32.mrf.mxu0
    %v128 = vpop.f32.mrf.mxu0
    %v129 = vpop.f32.mrf.mxu0
    %130 = vdwg.mxu0
    %vm131 = vcmask 1043456
    %v132 = vsel %vm131, %v126, 0.0
    %v133 = vrot.slane %v132, 4
    %v134 = vadd.f32 %v132, %v133
    %v135 = vrot.slane %v134, 2
    %v136 = vadd.f32 %v134, %v135
    %v137 = vrot.slane %v136, 1
    %v138 = vadd.f32 %v136, %v137
    %v139 = vrcp.pop 4.0
    %v140 = vmul.f32 %v138, %v139
    %v141 = vsub.f32 %v126, %v140
    %v142 = vmul.f32 %v141, %v141
    %v143 = vsel %vm131, %v142, 0.0
    %v144 = vrot.slane %v143, 4
    %v145 = vadd.f32 %v143, %v144
    %v146 = vrot.slane %v145, 2
    %v147 = vadd.f32 %v145, %v146
    %v148 = vrot.slane %v147, 1
    %v149 = vadd.f32 %v147, %v148
    %v150 = vmul.f32 %v149, %v139
    %v151 = vadd.f32 %v150, 1e-05
    %v152 = vrsqrt.pop %v151
    %v153 = vmul.f32 %v141, %v152
    %v154 = vld [vmem:[%s2] sm:$0x1]
    %v156 = vlaneseq
    %v157 = vshrl.u32 %v156, 7
    %v158 = vsub.s32 0, %v157
    %v159 = vrot.slane %v154, %v158
    %v161 = vmul.f32 %v153, %v159
    %v162 = vld [vmem:[%s3] sm:$0x1]
    %v164 = vlaneseq
    %v165 = vshrl.u32 %v164, 7
    %v166 = vsub.s32 0, %v165
    %v167 = vrot.slane %v162, %v166
    %v169 = vadd.f32 %v161, %v167
    %v170 = vmax.f32 %v169, 0.0
    %v171 = vpack.c.bf16 %v170, %v170
    %v172 = vld [vmem:[%s4] sm:$0xf]
    %v173 = vld [vmem:[%s4 + $0x4] sm:$0xf]
    %v174 = vld [vmem:[%s4 + $0x8] sm:$0xf]
    %v175 = vld [vmem:[%s4 + $0xc] sm:$0xf]
    %v176 = vld [vmem:[%s4 + $0x10] sm:$0xf]
    %v177 = vld [vmem:[%s4 + $0x14] sm:$0xf]
    %v178 = vld [vmem:[%s4 + $0x18] sm:$0xf]
    %v179 = vld [vmem:[%s4 + $0x1c] sm:$0xf]
    %v180 = vld [vmem:[%s4 + $0x20] sm:$0xf]
    %v181 = vld [vmem:[%s4 + $0x24] sm:$0xf]
    %v182 = vld [vmem:[%s4 + $0x28] sm:$0xf]
    %v183 = vld [vmem:[%s4 + $0x2c] sm:$0xf]
    %v184 = vld [vmem:[%s4 + $0x30] sm:$0xf]
    %v185 = vld [vmem:[%s4 + $0x34] sm:$0xf]
    %v186 = vld [vmem:[%s4 + $0x38] sm:$0xf]
    %v187 = vld [vmem:[%s4 + $0x3c] sm:$0xf]
    %v188 = vld [vmem:[%s5] sm:$0x1]
    %v190 = vlaneseq
    %v191 = vshrl.u32 %v190, 7
    %v192 = vsub.s32 0, %v191
    %v193 = vrot.slane %v188, %v192
    %v211 = vunpack.c.l.b16 %v172
    %v212 = vunpack.c.l.b16 %v173
    %v213 = vunpack.c.l.b16 %v174
    %v214 = vunpack.c.l.b16 %v175
    %v215 = vunpack.c.l.b16 %v176
    %v216 = vunpack.c.l.b16 %v177
    %v217 = vunpack.c.l.b16 %v178
    %v218 = vunpack.c.l.b16 %v179
    %v219 = vunpack.c.l.b16 %v180
    %v220 = vunpack.c.l.b16 %v181
    %v221 = vunpack.c.l.b16 %v182
    %v222 = vunpack.c.l.b16 %v183
    %v223 = vunpack.c.l.b16 %v184
    %v224 = vunpack.c.l.b16 %v185
    %v225 = vunpack.c.l.b16 %v186
    %v226 = vunpack.c.l.b16 %v187
    %v227 = vpack.c.b16 %v212, %v211
    %v228 = vpack.c.b16 %v214, %v213
    %v229 = vpack.c.b16 %v216, %v215
    %v230 = vpack.c.b16 %v218, %v217
    %v231 = vpack.c.b16 %v220, %v219
    %v232 = vpack.c.b16 %v222, %v221
    %v233 = vpack.c.b16 %v224, %v223
    %v234 = vpack.c.b16 %v226, %v225
    %243 = vmatprep.subr.bf16.mxu0 0
    %244 = vmatpush1.bf16.msra.mxu0 %v234
    %245 = vmatprep.subr.bf16.mxu0 0
    %246 = vmatpush1.bf16.msra.mxu0 %v233
    %247 = vmatprep.subr.bf16.mxu0 0
    %248 = vmatpush1.bf16.msra.mxu0 %v232
    %249 = vmatprep.subr.bf16.mxu0 0
    %250 = vmatpush1.bf16.msra.mxu0 %v231
    %251 = vmatprep.subr.bf16.mxu0 0
    %252 = vmatpush1.bf16.msra.mxu0 %v230
    %253 = vmatprep.subr.bf16.mxu0 0
    %254 = vmatpush1.bf16.msra.mxu0 %v229
    %255 = vmatprep.subr.bf16.mxu0 0
    %256 = vmatpush1.bf16.msra.mxu0 %v228
    %257 = vmatprep.subr.bf16.mxu0 0
    %258 = vmatpush1.bf16.msra.mxu0 %v227
    %259 = vmatprep.subr.bf16.mxu0 0
    %260 = vmatpush2.bf16.msra.mxu0 0
    %261 = vmatprep.subr.bf16.mxu0 0
    %262 = vmatpush2.bf16.msra.mxu0 0
    %263 = vmatprep.subr.bf16.mxu0 0
    %264 = vmatpush2.bf16.msra.mxu0 0
    %265 = vmatprep.subr.bf16.mxu0 0
    %266 = vmatpush2.bf16.msra.mxu0 0
    %267 = vmatprep.subr.bf16.mxu0 0
    %268 = vmatpush2.bf16.msra.mxu0 0
    %269 = vmatprep.subr.bf16.mxu0 0
    %270 = vmatpush2.bf16.msra.mxu0 0
    %271 = vmatprep.subr.bf16.mxu0 0
    %272 = vmatpush2.bf16.msra.mxu0 0
    %273 = vmatprep.subr.bf16.mxu0 0
    %274 = vmatpush2.bf16.msra.mxu0 0
    %275 = vmatprep.mubr.bf16.mxu0 0
    %276 = vmatmul.mubr.bf16.gmra.mxu0 %v171
    %v277 = vpop.f32.mrf.mxu0
    %v278 = vadd.f32 %v193, %v277
    %v279 = vpop.f32.mrf.mxu0
    %v280 = vpop.f32.mrf.mxu0
    %v281 = vpop.f32.mrf.mxu0
    %282 = vdwg.mxu0
    %283 = vst [vmem:[#allocation2] sm:$0xf] %v278
    // Predicated region
    $region26: #{simclr_forward.3} parent=1 // pred_check
      _
    $region27: #{simclr_forward.3} parent=1 // pred_check_branch
      %285 = sbr.rel (0) target = $region29
    $region28: #{simclr_forward.3} parent=1 // pred_region
      %s287 = ssub.s32 64, 64
      %288 = vsyncadd [#allocation3], %s287
      %s290 = sshll.u32 [#allocation2], 4
      %s291 = int_to_ptr.vmem [resolvable:$true] %s290
      %293 = dma.vmem_to_hbm [thread:$0]  %s291, 64, %s6, [#allocation3]
    $region29: #{simclr_forward.3} parent=1 // pred_fallthru
      _
    // Predicated region
    $region30: #{simclr_forward.3} parent=1 // pred_check
      _
    $region31: #{simclr_forward.3} parent=1 // pred_check_branch
      %295 = sbr.rel (0) target = $region33
    $region32: #{simclr_forward.3} parent=1 // pred_region
      %296 = dma.done [#allocation3], 64
    $region33: #{simclr_forward.3} parent=1 // pred_fallthru
      _
    %297 = vsyncpa [#allocation3], 1

// kernel: simclr_forward.2
$region0: #{simclr_forward.2}
  #allocation0 [shape = 'u32[]', space=smem, size = 0x4, offset = 0x4, fixed_abs, tag = 'smem constant byte address 0x4 - core index']
  #allocation1 [shape = 'u32[144,128]{1,0:T(1,128)}', space=vmem, size = 0x12000, scoped, tag = 'internal scratch']
  %s0 = inlined_call_operand.vmem [shape: bf16[4,256,128], index: 0, kind: input, shape index: {}]
  %s1 = inlined_call_operand.vmem [shape: bf16[128,128], index: 1, kind: input, shape index: {}]
  %s2 = inlined_call_operand.vmem [shape: f32[1,128], index: 2, kind: input, shape index: {}]
  %s3 = inlined_call_operand.vmem [shape: f32[4,128], index: 3, kind: output, shape index: {}]
  %s4 = sld [smem:[#allocation0]]
  $region22: #{simclr_forward.2} parent=0
    _
  %s6 = ssub.s32 1, %s4
  %s7 = scalar_select 0, %s6, %s4
  // Predicated region
  $region2: #{simclr_forward.2} parent=0 // pred_check
    _
  $region3: #{simclr_forward.2} parent=0 // pred_check_branch
    %9 = sbr.rel (0) target = $region5
  $region4: #{simclr_forward.2} parent=0 // pred_region
    _
  $region5: #{simclr_forward.2} parent=0 // pred_fallthru
    _
  // Predicated region
  $region6: #{simclr_forward.2} parent=0 // pred_check
    _
  $region7: #{simclr_forward.2} parent=0 // pred_check_branch
    %11 = sbr.rel (0) target = $region9
  $region8: #{simclr_forward.2} parent=0 // pred_region
    _
  $region9: #{simclr_forward.2} parent=0 // pred_fallthru
    _
  // Predicated region
  $region10: #{simclr_forward.2} parent=0 // pred_check
    _
  $region11: #{simclr_forward.2} parent=0 // pred_check_branch
    %13 = sbr.rel (0) target = $region13
  $region12: #{simclr_forward.2} parent=0 // pred_region
    _
  $region13: #{simclr_forward.2} parent=0 // pred_fallthru
    _
  %v15 = vld [vmem:[%s0] sm:$0xf]
  %v16 = vld [vmem:[%s0 + $0x4] sm:$0xf]
  %v17 = vld [vmem:[%s0 + $0x8] sm:$0xf]
  %v18 = vld [vmem:[%s0 + $0xc] sm:$0xf]
  %v19 = vld [vmem:[%s0 + $0x10] sm:$0xf]
  %v20 = vld [vmem:[%s0 + $0x14] sm:$0xf]
  %v21 = vld [vmem:[%s0 + $0x18] sm:$0xf]
  %v22 = vld [vmem:[%s0 + $0x1c] sm:$0xf]
  %v23 = vld [vmem:[%s0 + $0x20] sm:$0xf]
  %v24 = vld [vmem:[%s0 + $0x24] sm:$0xf]
  %v25 = vld [vmem:[%s0 + $0x28] sm:$0xf]
  %v26 = vld [vmem:[%s0 + $0x2c] sm:$0xf]
  %v27 = vld [vmem:[%s0 + $0x30] sm:$0xf]
  %v28 = vld [vmem:[%s0 + $0x34] sm:$0xf]
  %v29 = vld [vmem:[%s0 + $0x38] sm:$0xf]
  %v30 = vld [vmem:[%s0 + $0x3c] sm:$0xf]
  %v31 = vld [vmem:[%s0 + $0x40] sm:$0xf]
  %v32 = vld [vmem:[%s0 + $0x44] sm:$0xf]
  %v33 = vld [vmem:[%s0 + $0x48] sm:$0xf]
  %v34 = vld [vmem:[%s0 + $0x4c] sm:$0xf]
  %v35 = vld [vmem:[%s0 + $0x50] sm:$0xf]
  %v36 = vld [vmem:[%s0 + $0x54] sm:$0xf]
  %v37 = vld [vmem:[%s0 + $0x58] sm:$0xf]
  %v38 = vld [vmem:[%s0 + $0x5c] sm:$0xf]
  %v39 = vld [vmem:[%s0 + $0x60] sm:$0xf]
  %v40 = vld [vmem:[%s0 + $0x64] sm:$0xf]
  %v41 = vld [vmem:[%s0 + $0x68] sm:$0xf]
  %v42 = vld [vmem:[%s0 + $0x6c] sm:$0xf]
  %v43 = vld [vmem:[%s0 + $0x70] sm:$0xf]
  %v44 = vld [vmem:[%s0 + $0x74] sm:$0xf]
  %v45 = vld [vmem:[%s0 + $0x78] sm:$0xf]
  %v46 = vld [vmem:[%s0 + $0x7c] sm:$0xf]
  %v47 = vld [vmem:[%s0 + $0x80] sm:$0xf]
  %v48 = vld [vmem:[%s0 + $0x84] sm:$0xf]
  %v49 = vld [vmem:[%s0 + $0x88] sm:$0xf]
  %v50 = vld [vmem:[%s0 + $0x8c] sm:$0xf]
  %v51 = vld [vmem:[%s0 + $0x90] sm:$0xf]
  %v52 = vld [vmem:[%s0 + $0x94] sm:$0xf]
  %v53 = vld [vmem:[%s0 + $0x98] sm:$0xf]
  %v54 = vld [vmem:[%s0 + $0x9c] sm:$0xf]
  %v55 = vld [vmem:[%s0 + $0xa0] sm:$0xf]
  %v56 = vld [vmem:[%s0 + $0xa4] sm:$0xf]
  %v57 = vld [vmem:[%s0 + $0xa8] sm:$0xf]
  %v58 = vld [vmem:[%s0 + $0xac] sm:$0xf]
  %v59 = vld [vmem:[%s0 + $0xb0] sm:$0xf]
  %v60 = vld [vmem:[%s0 + $0xb4] sm:$0xf]
  %v61 = vld [vmem:[%s0 + $0xb8] sm:$0xf]
  %v62 = vld [vmem:[%s0 + $0xbc] sm:$0xf]
  %v63 = vld [vmem:[%s0 + $0xc0] sm:$0xf]
  %v64 = vld [vmem:[%s0 + $0xc4] sm:$0xf]
  %v65 = vld [vmem:[%s0 + $0xc8] sm:$0xf]
  %v66 = vld [vmem:[%s0 + $0xcc] sm:$0xf]
  %v67 = vld [vmem:[%s0 + $0xd0] sm:$0xf]
  %v68 = vld [vmem:[%s0 + $0xd4] sm:$0xf]
  %v69 = vld [vmem:[%s0 + $0xd8] sm:$0xf]
  %v70 = vld [vmem:[%s0 + $0xdc] sm:$0xf]
  %v71 = vld [vmem:[%s0 + $0xe0] sm:$0xf]
  %v72 = vld [vmem:[%s0 + $0xe4] sm:$0xf]
  %v73 = vld [vmem:[%s0 + $0xe8] sm:$0xf]
  %v74 = vld [vmem:[%s0 + $0xec] sm:$0xf]
  %v75 = vld [vmem:[%s0 + $0xf0] sm:$0xf]
  %v76 = vld [vmem:[%s0 + $0xf4] sm:$0xf]
  %v77 = vld [vmem:[%s0 + $0xf8] sm:$0xf]
  %v78 = vld [vmem:[%s0 + $0xfc] sm:$0xf]
  %v79 = vld [vmem:[%s0 + $0x100] sm:$0xf]
  %v80 = vld [vmem:[%s0 + $0x104] sm:$0xf]
  %v81 = vld [vmem:[%s0 + $0x108] sm:$0xf]
  %v82 = vld [vmem:[%s0 + $0x10c] sm:$0xf]
  %v83 = vld [vmem:[%s0 + $0x110] sm:$0xf]
  %v84 = vld [vmem:[%s0 + $0x114] sm:$0xf]
  %v85 = vld [vmem:[%s0 + $0x118] sm:$0xf]
  %v86 = vld [vmem:[%s0 + $0x11c] sm:$0xf]
  %v87 = vld [vmem:[%s0 + $0x120] sm:$0xf]
  %v88 = vld [vmem:[%s0 + $0x124] sm:$0xf]
  %v89 = vld [vmem:[%s0 + $0x128] sm:$0xf]
  %v90 = vld [vmem:[%s0 + $0x12c] sm:$0xf]
  %v91 = vld [vmem:[%s0 + $0x130] sm:$0xf]
  %v92 = vld [vmem:[%s0 + $0x134] sm:$0xf]
  %v93 = vld [vmem:[%s0 + $0x138] sm:$0xf]
  %v94 = vld [vmem:[%s0 + $0x13c] sm:$0xf]
  %v95 = vld [vmem:[%s0 + $0x140] sm:$0xf]
  %v96 = vld [vmem:[%s0 + $0x144] sm:$0xf]
  %v97 = vld [vmem:[%s0 + $0x148] sm:$0xf]
  %v98 = vld [vmem:[%s0 + $0x14c] sm:$0xf]
  %v99 = vld [vmem:[%s0 + $0x150] sm:$0xf]
  %v100 = vld [vmem:[%s0 + $0x154] sm:$0xf]
  %v101 = vld [vmem:[%s0 + $0x158] sm:$0xf]
  %v102 = vld [vmem:[%s0 + $0x15c] sm:$0xf]
  %v103 = vld [vmem:[%s0 + $0x160] sm:$0xf]
  %v104 = vld [vmem:[%s0 + $0x164] sm:$0xf]
  %v105 = vld [vmem:[%s0 + $0x168] sm:$0xf]
  %v106 = vld [vmem:[%s0 + $0x16c] sm:$0xf]
  %v107 = vld [vmem:[%s0 + $0x170] sm:$0xf]
  %v108 = vld [vmem:[%s0 + $0x174] sm:$0xf]
  %v109 = vld [vmem:[%s0 + $0x178] sm:$0xf]
  %v110 = vld [vmem:[%s0 + $0x17c] sm:$0xf]
  %v111 = vld [vmem:[%s0 + $0x180] sm:$0xf]
  %v112 = vld [vmem:[%s0 + $0x184] sm:$0xf]
  %v113 = vld [vmem:[%s0 + $0x188] sm:$0xf]
  %v114 = vld [vmem:[%s0 + $0x18c] sm:$0xf]
  %v115 = vld [vmem:[%s0 + $0x190] sm:$0xf]
  %v116 = vld [vmem:[%s0 + $0x194] sm:$0xf]
  %v117 = vld [vmem:[%s0 + $0x198] sm:$0xf]
  %v118 = vld [vmem:[%s0 + $0x19c] sm:$0xf]
  %v119 = vld [vmem:[%s0 + $0x1a0] sm:$0xf]
  %v120 = vld [vmem:[%s0 + $0x1a4] sm:$0xf]
  %v121 = vld [vmem:[%s0 + $0x1a8] sm:$0xf]
  %v122 = vld [vmem:[%s0 + $0x1ac] sm:$0xf]
  %v123 = vld [vmem:[%s0 + $0x1b0] sm:$0xf]
  %v124 = vld [vmem:[%s0 + $0x1b4] sm:$0xf]
  %v125 = vld [vmem:[%s0 + $0x1b8] sm:$0xf]
  %v126 = vld [vmem:[%s0 + $0x1bc] sm:$0xf]
  %v127 = vld [vmem:[%s0 + $0x1c0] sm:$0xf]
  %v128 = vld [vmem:[%s0 + $0x1c4] sm:$0xf]
  %v129 = vld [vmem:[%s0 + $0x1c8] sm:$0xf]
  %v130 = vld [vmem:[%s0 + $0x1cc] sm:$0xf]
  %v131 = vld [vmem:[%s0 + $0x1d0] sm:$0xf]
  %v132 = vld [vmem:[%s0 + $0x1d4] sm:$0xf]
  %v133 = vld [vmem:[%s0 + $0x1d8] sm:$0xf]
  %v134 = vld [vmem:[%s0 + $0x1dc] sm:$0xf]
  %v135 = vld [vmem:[%s0 + $0x1e0] sm:$0xf]
  %v136 = vld [vmem:[%s0 + $0x1e4] sm:$0xf]
  %v137 = vld [vmem:[%s0 + $0x1e8] sm:$0xf]
  %v138 = vld [vmem:[%s0 + $0x1ec] sm:$0xf]
  %v139 = vld [vmem:[%s0 + $0x1f0] sm:$0xf]
  %v140 = vld [vmem:[%s0 + $0x1f4] sm:$0xf]
  %v141 = vld [vmem:[%s0 + $0x1f8] sm:$0xf]
  %v142 = vld [vmem:[%s0 + $0x1fc] sm:$0xf]
  %v143 = vld [vmem:[%s1] sm:$0xf]
  %v144 = vld [vmem:[%s1 + $0x4] sm:$0xf]
  %v145 = vld [vmem:[%s1 + $0x8] sm:$0xf]
  %v146 = vld [vmem:[%s1 + $0xc] sm:$0xf]
  %v147 = vld [vmem:[%s1 + $0x10] sm:$0xf]
  %v148 = vld [vmem:[%s1 + $0x14] sm:$0xf]
  %v149 = vld [vmem:[%s1 + $0x18] sm:$0xf]
  %v150 = vld [vmem:[%s1 + $0x1c] sm:$0xf]
  %v151 = vld [vmem:[%s1 + $0x20] sm:$0xf]
  %v152 = vld [vmem:[%s1 + $0x24] sm:$0xf]
  %v153 = vld [vmem:[%s1 + $0x28] sm:$0xf]
  %v154 = vld [vmem:[%s1 + $0x2c] sm:$0xf]
  %v155 = vld [vmem:[%s1 + $0x30] sm:$0xf]
  %v156 = vld [vmem:[%s1 + $0x34] sm:$0xf]
  %v157 = vld [vmem:[%s1 + $0x38] sm:$0xf]
  %v158 = vld [vmem:[%s1 + $0x3c] sm:$0xf]
  %v159 = vld [vmem:[%s2] sm:$0x1]
  %v161 = vlaneseq
  %v162 = vshrl.u32 %v161, 7
  %v163 = vsub.s32 0, %v162
  %v164 = vrot.slane %v159, %v163
  %v294 = vunpack.c.l.b16 %v15
  %v295 = vunpack.c.l.b16 %v16
  %v296 = vunpack.c.l.b16 %v17
  %v297 = vunpack.c.l.b16 %v18
  %v298 = vunpack.c.l.b16 %v19
  %v299 = vunpack.c.l.b16 %v20
  %v300 = vunpack.c.l.b16 %v21
  %v301 = vunpack.c.l.b16 %v22
  %v302 = vunpack.c.l.b16 %v23
  %v303 = vunpack.c.l.b16 %v24
  %v304 = vunpack.c.l.b16 %v25
  %v305 = vunpack.c.l.b16 %v26
  %v306 = vunpack.c.l.b16 %v27
  %v307 = vunpack.c.l.b16 %v28
  %v308 = vunpack.c.l.b16 %v29
  %v309 = vunpack.c.l.b16 %v30
  %v310 = vunpack.c.l.b16 %v31
  %v311 = vunpack.c.l.b16 %v32
  %v312 = vunpack.c.l.b16 %v33
  %v313 = vunpack.c.l.b16 %v34
  %v314 = vunpack.c.l.b16 %v35
  %v315 = vunpack.c.l.b16 %v36
  %v316 = vunpack.c.l.b16 %v37
  %v317 = vunpack.c.l.b16 %v38
  %v318 = vunpack.c.l.b16 %v39
  %v319 = vunpack.c.l.b16 %v40
  %v320 = vunpack.c.l.b16 %v41
  %v321 = vunpack.c.l.b16 %v42
  %v322 = vunpack.c.l.b16 %v43
  %v323 = vunpack.c.l.b16 %v44
  %v324 = vunpack.c.l.b16 %v45
  %v325 = vunpack.c.l.b16 %v46
  %v326 = vunpack.c.l.b16 %v47
  %v327 = vunpack.c.l.b16 %v48
  %v328 = vunpack.c.l.b16 %v49
  %v329 = vunpack.c.l.b16 %v50
  %v330 = vunpack.c.l.b16 %v51
  %v331 = vunpack.c.l.b16 %v52
  %v332 = vunpack.c.l.b16 %v53
  %v333 = vunpack.c.l.b16 %v54
  %v334 = vunpack.c.l.b16 %v55
  %v335 = vunpack.c.l.b16 %v56
  %v336 = vunpack.c.l.b16 %v57
  %v337 = vunpack.c.l.b16 %v58
  %v338 = vunpack.c.l.b16 %v59
  %v339 = vunpack.c.l.b16 %v60
  %v340 = vunpack.c.l.b16 %v61
  %v341 = vunpack.c.l.b16 %v62
  %v342 = vunpack.c.l.b16 %v63
  %v343 = vunpack.c.l.b16 %v64
  %v344 = vunpack.c.l.b16 %v65
  %v345 = vunpack.c.l.b16 %v66
  %v346 = vunpack.c.l.b16 %v67
  %v347 = vunpack.c.l.b16 %v68
  %v348 = vunpack.c.l.b16 %v69
  %v349 = vunpack.c.l.b16 %v70
  %v350 = vunpack.c.l.b16 %v71
  %v351 = vunpack.c.l.b16 %v72
  %v352 = vunpack.c.l.b16 %v73
  %v353 = vunpack.c.l.b16 %v74
  %v354 = vunpack.c.l.b16 %v75
  %v355 = vunpack.c.l.b16 %v76
  %v356 = vunpack.c.l.b16 %v77
  %v357 = vunpack.c.l.b16 %v78
  %v358 = vunpack.c.l.b16 %v79
  %v359 = vunpack.c.l.b16 %v80
  %v360 = vunpack.c.l.b16 %v81
  %v361 = vunpack.c.l.b16 %v82
  %v362 = vunpack.c.l.b16 %v83
  %v363 = vunpack.c.l.b16 %v84
  %v364 = vunpack.c.l.b16 %v85
  %v365 = vunpack.c.l.b16 %v86
  %v366 = vunpack.c.l.b16 %v87
  %v367 = vunpack.c.l.b16 %v88
  %v368 = vunpack.c.l.b16 %v89
  %v369 = vunpack.c.l.b16 %v90
  %v370 = vunpack.c.l.b16 %v91
  %v371 = vunpack.c.l.b16 %v92
  %v372 = vunpack.c.l.b16 %v93
  %v373 = vunpack.c.l.b16 %v94
  %v374 = vunpack.c.l.b16 %v95
  %v375 = vunpack.c.l.b16 %v96
  %v376 = vunpack.c.l.b16 %v97
  %v377 = vunpack.c.l.b16 %v98
  %v378 = vunpack.c.l.b16 %v99
  %v379 = vunpack.c.l.b16 %v100
  %v380 = vunpack.c.l.b16 %v101
  %v381 = vunpack.c.l.b16 %v102
  %v382 = vunpack.c.l.b16 %v103
  %v383 = vunpack.c.l.b16 %v104
  %v384 = vunpack.c.l.b16 %v105
  %v385 = vunpack.c.l.b16 %v106
  %v386 = vunpack.c.l.b16 %v107
  %v387 = vunpack.c.l.b16 %v108
  %v388 = vunpack.c.l.b16 %v109
  %v389 = vunpack.c.l.b16 %v110
  %v390 = vunpack.c.l.b16 %v111
  %v391 = vunpack.c.l.b16 %v112
  %v392 = vunpack.c.l.b16 %v113
  %v393 = vunpack.c.l.b16 %v114
  %v394 = vunpack.c.l.b16 %v115
  %v395 = vunpack.c.l.b16 %v116
  %v396 = vunpack.c.l.b16 %v117
  %v397 = vunpack.c.l.b16 %v118
  %v398 = vunpack.c.l.b16 %v119
  %v399 = vunpack.c.l.b16 %v120
  %v400 = vunpack.c.l.b16 %v121
  %v401 = vunpack.c.l.b16 %v122
  %v402 = vunpack.c.l.b16 %v123
  %v403 = vunpack.c.l.b16 %v124
  %v404 = vunpack.c.l.b16 %v125
  %v405 = vunpack.c.l.b16 %v126
  %v406 = vunpack.c.l.b16 %v127
  %v407 = vunpack.c.l.b16 %v128
  %v408 = vunpack.c.l.b16 %v129
  %v409 = vunpack.c.l.b16 %v130
  %v410 = vunpack.c.l.b16 %v131
  %v411 = vunpack.c.l.b16 %v132
  %v412 = vunpack.c.l.b16 %v133
  %v413 = vunpack.c.l.b16 %v134
  %v414 = vunpack.c.l.b16 %v135
  %v415 = vunpack.c.l.b16 %v136
  %v416 = vunpack.c.l.b16 %v137
  %v417 = vunpack.c.l.b16 %v138
  %v418 = vunpack.c.l.b16 %v139
  %v419 = vunpack.c.l.b16 %v140
  %v420 = vunpack.c.l.b16 %v141
  %v421 = vunpack.c.l.b16 %v142
  %v422 = vpack.c.b16 %v295, %v294
  %v423 = vpack.c.b16 %v297, %v296
  %v424 = vpack.c.b16 %v299, %v298
  %v425 = vpack.c.b16 %v301, %v300
  %v426 = vpack.c.b16 %v303, %v302
  %v427 = vpack.c.b16 %v305, %v304
  %v428 = vpack.c.b16 %v307, %v306
  %v429 = vpack.c.b16 %v309, %v308
  %v430 = vpack.c.b16 %v311, %v310
  %v431 = vpack.c.b16 %v313, %v312
  %v432 = vpack.c.b16 %v315, %v314
  %v433 = vpack.c.b16 %v317, %v316
  %v434 = vpack.c.b16 %v319, %v318
  %v435 = vpack.c.b16 %v321, %v320
  %v436 = vpack.c.b16 %v323, %v322
  %v437 = vpack.c.b16 %v325, %v324
  %v438 = vpack.c.b16 %v327, %v326
  %v439 = vpack.c.b16 %v329, %v328
  %v440 = vpack.c.b16 %v331, %v330
  %v441 = vpack.c.b16 %v333, %v332
  %v442 = vpack.c.b16 %v335, %v334
  %v443 = vpack.c.b16 %v337, %v336
  %v444 = vpack.c.b16 %v339, %v338
  %v445 = vpack.c.b16 %v341, %v340
  %v446 = vpack.c.b16 %v343, %v342
  %v447 = vpack.c.b16 %v345, %v344
  %v448 = vpack.c.b16 %v347, %v346
  %v449 = vpack.c.b16 %v349, %v348
  %v450 = vpack.c.b16 %v351, %v350
  %v451 = vpack.c.b16 %v353, %v352
  %v452 = vpack.c.b16 %v355, %v354
  %v453 = vpack.c.b16 %v357, %v356
  %v454 = vpack.c.b16 %v359, %v358
  %v455 = vpack.c.b16 %v361, %v360
  %v456 = vpack.c.b16 %v363, %v362
  %v457 = vpack.c.b16 %v365, %v364
  %v458 = vpack.c.b16 %v367, %v366
  %v459 = vpack.c.b16 %v369, %v368
  %v460 = vpack.c.b16 %v371, %v370
  %v461 = vpack.c.b16 %v373, %v372
  %v462 = vpack.c.b16 %v375, %v374
  %v463 = vpack.c.b16 %v377, %v376
  %v464 = vpack.c.b16 %v379, %v378
  %v465 = vpack.c.b16 %v381, %v380
  %v466 = vpack.c.b16 %v383, %v382
  %v467 = vpack.c.b16 %v385, %v384
  %v468 = vpack.c.b16 %v387, %v386
  %v469 = vpack.c.b16 %v389, %v388
  %v470 = vpack.c.b16 %v391, %v390
  %v471 = vpack.c.b16 %v393, %v392
  %v472 = vpack.c.b16 %v395, %v394
  %v473 = vpack.c.b16 %v397, %v396
  %v474 = vpack.c.b16 %v399, %v398
  %v475 = vpack.c.b16 %v401, %v400
  %v476 = vpack.c.b16 %v403, %v402
  %v477 = vpack.c.b16 %v405, %v404
  %v478 = vpack.c.b16 %v407, %v406
  %v479 = vpack.c.b16 %v409, %v408
  %v480 = vpack.c.b16 %v411, %v410
  %v481 = vpack.c.b16 %v413, %v412
  %v482 = vpack.c.b16 %v415, %v414
  %v483 = vpack.c.b16 %v417, %v416
  %v484 = vpack.c.b16 %v419, %v418
  %v485 = vpack.c.b16 %v421, %v420
  %v566 = vunpack.c.l.b16 %v143
  %v567 = vunpack.c.l.b16 %v144
  %v568 = vunpack.c.l.b16 %v145
  %v569 = vunpack.c.l.b16 %v146
  %v570 = vunpack.c.l.b16 %v147
  %v571 = vunpack.c.l.b16 %v148
  %v572 = vunpack.c.l.b16 %v149
  %v573 = vunpack.c.l.b16 %v150
  %v574 = vunpack.c.l.b16 %v151
  %v575 = vunpack.c.l.b16 %v152
  %v576 = vunpack.c.l.b16 %v153
  %v577 = vunpack.c.l.b16 %v154
  %v578 = vunpack.c.l.b16 %v155
  %v579 = vunpack.c.l.b16 %v156
  %v580 = vunpack.c.l.b16 %v157
  %v581 = vunpack.c.l.b16 %v158
  %v582 = vpack.c.b16 %v567, %v566
  %v583 = vpack.c.b16 %v569, %v568
  %v584 = vpack.c.b16 %v571, %v570
  %v585 = vpack.c.b16 %v573, %v572
  %v586 = vpack.c.b16 %v575, %v574
  %v587 = vpack.c.b16 %v577, %v576
  %v588 = vpack.c.b16 %v579, %v578
  %v589 = vpack.c.b16 %v581, %v580
  %598 = vmatprep.subr.bf16.mxu0 0
  %599 = vmatpush1.bf16.msra.mxu0 %v589
  %600 = vmatprep.subr.bf16.mxu0 0
  %601 = vmatpush1.bf16.msra.mxu0 %v588
  %602 = vmatprep.subr.bf16.mxu0 0
  %603 = vmatpush1.bf16.msra.mxu0 %v587
  %604 = vmatprep.subr.bf16.mxu0 0
  %605 = vmatpush1.bf16.msra.mxu0 %v586
  %606 = vmatprep.subr.bf16.mxu0 0
  %607 = vmatpush1.bf16.msra.mxu0 %v585
  %608 = vmatprep.subr.bf16.mxu0 0
  %609 = vmatpush1.bf16.msra.mxu0 %v584
  %610 = vmatprep.subr.bf16.mxu0 0
  %611 = vmatpush1.bf16.msra.mxu0 %v583
  %612 = vmatprep.subr.bf16.mxu0 0
  %613 = vmatpush1.bf16.msra.mxu0 %v582
  %614 = vmatprep.subr.bf16.mxu0 0
  %615 = vmatpush2.bf16.msra.mxu0 0
  %616 = vmatprep.subr.bf16.mxu0 0
  %617 = vmatpush2.bf16.msra.mxu0 0
  %618 = vmatprep.subr.bf16.mxu0 0
  %619 = vmatpush2.bf16.msra.mxu0 0
  %620 = vmatprep.subr.bf16.mxu0 0
  %621 = vmatpush2.bf16.msra.mxu0 0
  %622 = vmatprep.subr.bf16.mxu0 0
  %623 = vmatpush2.bf16.msra.mxu0 0
  %624 = vmatprep.subr.bf16.mxu0 0
  %625 = vmatpush2.bf16.msra.mxu0 0
  %626 = vmatprep.subr.bf16.mxu0 0
  %627 = vmatpush2.bf16.msra.mxu0 0
  %628 = vmatprep.subr.bf16.mxu0 0
  %629 = vmatpush2.bf16.msra.mxu0 0
  %630 = vmatprep.mubr.bf16.mxu0 0
  %631 = vmatmul.mubr.bf16.gmra.mxu0 %v422
  %v632 = vpop.f32.mrf.mxu0
  %v633 = vadd.f32 %v164, %v632
  %v634 = vpop.f32.mrf.mxu0
  %v635 = vpop.f32.mrf.mxu0
  %v636 = vadd.f32 %v164, %v635
  %v637 = vpop.f32.mrf.mxu0
  %638 = vmatprep.mubr.bf16.mxu0 0
  %639 = vmatmul.mubr.bf16.gmra.mxu0 %v423
  %v640 = vpop.f32.mrf.mxu0
  %v641 = vadd.f32 %v164, %v640
  %v642 = vpop.f32.mrf.mxu0
  %v643 = vpop.f32.mrf.mxu0
  %v644 = vadd.f32 %v164, %v643
  %v645 = vpop.f32.mrf.mxu0
  %646 = vmatprep.mubr.bf16.mxu0 0
  %647 = vmatmul.mubr.bf16.gmra.mxu0 %v424
  %v648 = vpop.f32.mrf.mxu0
  %v649 = vadd.f32 %v164, %v648
  %v650 = vpop.f32.mrf.mxu0
  %v651 = vpop.f32.mrf.mxu0
  %v652 = vadd.f32 %v164, %v651
  %v653 = vpop.f32.mrf.mxu0
  %654 = vmatprep.mubr.bf16.mxu0 0
  %655 = vmatmul.mubr.bf16.gmra.mxu0 %v425
  %v656 = vpop.f32.mrf.mxu0
  %v657 = vadd.f32 %v164, %v656
  %v658 = vpop.f32.mrf.mxu0
  %v659 = vpop.f32.mrf.mxu0
  %v660 = vadd.f32 %v164, %v659
  %v661 = vpop.f32.mrf.mxu0
  %662 = vmatprep.mubr.bf16.mxu0 0
  %663 = vmatmul.mubr.bf16.gmra.mxu0 %v426
  %v664 = vpop.f32.mrf.mxu0
  %v665 = vadd.f32 %v164, %v664
  %v666 = vpop.f32.mrf.mxu0
  %v667 = vpop.f32.mrf.mxu0
  %v668 = vadd.f32 %v164, %v667
  %v669 = vpop.f32.mrf.mxu0
  %670 = vmatprep.mubr.bf16.mxu0 0
  %671 = vmatmul.mubr.bf16.gmra.mxu0 %v427
  %v672 = vpop.f32.mrf.mxu0
  %v673 = vadd.f32 %v164, %v672
  %v674 = vpop.f32.mrf.mxu0
  %v675 = vpop.f32.mrf.mxu0
  %v676 = vadd.f32 %v164, %v675
  %v677 = vpop.f32.mrf.mxu0
  %678 = vmatprep.mubr.bf16.mxu0 0
  %679 = vmatmul.mubr.bf16.gmra.mxu0 %v428
  %v680 = vpop.f32.mrf.mxu0
  %v681 = vadd.f32 %v164, %v680
  %v682 = vpop.f32.mrf.mxu0
  %v683 = vpop.f32.mrf.mxu0
  %v684 = vadd.f32 %v164, %v683
  %v685 = vpop.f32.mrf.mxu0
  %686 = vmatprep.mubr.bf16.mxu0 0
  %687 = vmatmul.mubr.bf16.gmra.mxu0 %v429
  %v688 = vpop.f32.mrf.mxu0
  %v689 = vadd.f32 %v164, %v688
  %v690 = vpop.f32.mrf.mxu0
  %v691 = vpop.f32.mrf.mxu0
  %v692 = vadd.f32 %v164, %v691
  %v693 = vpop.f32.mrf.mxu0
  %694 = vmatprep.mubr.bf16.mxu0 0
  %695 = vmatmul.mubr.bf16.gmra.mxu0 %v430
  %v696 = vpop.f32.mrf.mxu0
  %v697 = vadd.f32 %v164, %v696
  %v698 = vpop.f32.mrf.mxu0
  %v699 = vpop.f32.mrf.mxu0
  %v700 = vadd.f32 %v164, %v699
  %v701 = vpop.f32.mrf.mxu0
  %702 = vmatprep.mubr.bf16.mxu0 0
  %703 = vmatmul.mubr.bf16.gmra.mxu0 %v431
  %v704 = vpop.f32.mrf.mxu0
  %v705 = vadd.f32 %v164, %v704
  %v706 = vpop.f32.mrf.mxu0
  %v707 = vpop.f32.mrf.mxu0
  %v708 = vadd.f32 %v164, %v707
  %v709 = vpop.f32.mrf.mxu0
  %710 = vmatprep.mubr.bf16.mxu0 0
  %711 = vmatmul.mubr.bf16.gmra.mxu0 %v432
  %v712 = vpop.f32.mrf.mxu0
  %v713 = vadd.f32 %v164, %v712
  %v714 = vpop.f32.mrf.mxu0
  %v715 = vpop.f32.mrf.mxu0
  %v716 = vadd.f32 %v164, %v715
  %v717 = vpop.f32.mrf.mxu0
  %718 = vmatprep.mubr.bf16.mxu0 0
  %719 = vmatmul.mubr.bf16.gmra.mxu0 %v433
  %v720 = vpop.f32.mrf.mxu0
  %v721 = vadd.f32 %v164, %v720
  %v722 = vpop.f32.mrf.mxu0
  %v723 = vpop.f32.mrf.mxu0
  %v724 = vadd.f32 %v164, %v723
  %v725 = vpop.f32.mrf.mxu0
  %726 = vmatprep.mubr.bf16.mxu0 0
  %727 = vmatmul.mubr.bf16.gmra.mxu0 %v434
  %v728 = vpop.f32.mrf.mxu0
  %v729 = vadd.f32 %v164, %v728
  %v730 = vpop.f32.mrf.mxu0
  %v731 = vpop.f32.mrf.mxu0
  %v732 = vadd.f32 %v164, %v731
  %v733 = vpop.f32.mrf.mxu0
  %734 = vmatprep.mubr.bf16.mxu0 0
  %735 = vmatmul.mubr.bf16.gmra.mxu0 %v435
  %v736 = vpop.f32.mrf.mxu0
  %v737 = vadd.f32 %v164, %v736
  %v738 = vpop.f32.mrf.mxu0
  %v739 = vpop.f32.mrf.mxu0
  %v740 = vadd.f32 %v164, %v739
  %v741 = vpop.f32.mrf.mxu0
  %742 = vmatprep.mubr.bf16.mxu0 0
  %743 = vmatmul.mubr.bf16.gmra.mxu0 %v436
  %v744 = vpop.f32.mrf.mxu0
  %v745 = vadd.f32 %v164, %v744
  %v746 = vpop.f32.mrf.mxu0
  %v747 = vpop.f32.mrf.mxu0
  %v748 = vadd.f32 %v164, %v747
  %v749 = vpop.f32.mrf.mxu0
  %750 = vmatprep.mubr.bf16.mxu0 0
  %751 = vmatmul.mubr.bf16.gmra.mxu0 %v437
  %v752 = vpop.f32.mrf.mxu0
  %v753 = vadd.f32 %v164, %v752
  %v754 = vpop.f32.mrf.mxu0
  %v755 = vpop.f32.mrf.mxu0
  %v756 = vadd.f32 %v164, %v755
  %v757 = vpop.f32.mrf.mxu0
  %758 = vmatprep.mubr.bf16.mxu0 0
  %759 = vmatmul.mubr.bf16.gmra.mxu0 %v438
  %v760 = vpop.f32.mrf.mxu0
  %v761 = vadd.f32 %v164, %v760
  %v762 = vpop.f32.mrf.mxu0
  %v763 = vpop.f32.mrf.mxu0
  %v764 = vadd.f32 %v164, %v763
  %v765 = vpop.f32.mrf.mxu0
  %766 = vmatprep.mubr.bf16.mxu0 0
  %767 = vmatmul.mubr.bf16.gmra.mxu0 %v439
  %v768 = vpop.f32.mrf.mxu0
  %v769 = vadd.f32 %v164, %v768
  %v770 = vpop.f32.mrf.mxu0
  %v771 = vpop.f32.mrf.mxu0
  %v772 = vadd.f32 %v164, %v771
  %v773 = vpop.f32.mrf.mxu0
  %774 = vmatprep.mubr.bf16.mxu0 0
  %775 = vmatmul.mubr.bf16.gmra.mxu0 %v440
  %v776 = vpop.f32.mrf.mxu0
  %v777 = vadd.f32 %v164, %v776
  %v778 = vpop.f32.mrf.mxu0
  %v779 = vpop.f32.mrf.mxu0
  %v780 = vadd.f32 %v164, %v779
  %v781 = vpop.f32.mrf.mxu0
  %782 = vmatprep.mubr.bf16.mxu0 0
  %783 = vmatmul.mubr.bf16.gmra.mxu0 %v441
  %v784 = vpop.f32.mrf.mxu0
  %v785 = vadd.f32 %v164, %v784
  %v786 = vpop.f32.mrf.mxu0
  %v787 = vpop.f32.mrf.mxu0
  %v788 = vadd.f32 %v164, %v787
  %v789 = vpop.f32.mrf.mxu0
  %790 = vmatprep.mubr.bf16.mxu0 0
  %791 = vmatmul.mubr.bf16.gmra.mxu0 %v442
  %v792 = vpop.f32.mrf.mxu0
  %v793 = vadd.f32 %v164, %v792
  %v794 = vpop.f32.mrf.mxu0
  %v795 = vpop.f32.mrf.mxu0
  %v796 = vadd.f32 %v164, %v795
  %v797 = vpop.f32.mrf.mxu0
  %798 = vmatprep.mubr.bf16.mxu0 0
  %799 = vmatmul.mubr.bf16.gmra.mxu0 %v443
  %v800 = vpop.f32.mrf.mxu0
  %v801 = vadd.f32 %v164, %v800
  %v802 = vpop.f32.mrf.mxu0
  %v803 = vpop.f32.mrf.mxu0
  %v804 = vadd.f32 %v164, %v803
  %v805 = vpop.f32.mrf.mxu0
  %806 = vmatprep.mubr.bf16.mxu0 0
  %807 = vmatmul.mubr.bf16.gmra.mxu0 %v444
  %v808 = vpop.f32.mrf.mxu0
  %v809 = vadd.f32 %v164, %v808
  %v810 = vpop.f32.mrf.mxu0
  %v811 = vpop.f32.mrf.mxu0
  %v812 = vadd.f32 %v164, %v811
  %v813 = vpop.f32.mrf.mxu0
  %814 = vmatprep.mubr.bf16.mxu0 0
  %815 = vmatmul.mubr.bf16.gmra.mxu0 %v445
  %v816 = vpop.f32.mrf.mxu0
  %v817 = vadd.f32 %v164, %v816
  %v818 = vpop.f32.mrf.mxu0
  %v819 = vpop.f32.mrf.mxu0
  %v820 = vadd.f32 %v164, %v819
  %v821 = vpop.f32.mrf.mxu0
  %822 = vmatprep.mubr.bf16.mxu0 0
  %823 = vmatmul.mubr.bf16.gmra.mxu0 %v446
  %v824 = vpop.f32.mrf.mxu0
  %v825 = vadd.f32 %v164, %v824
  %v826 = vpop.f32.mrf.mxu0
  %v827 = vpop.f32.mrf.mxu0
  %v828 = vadd.f32 %v164, %v827
  %v829 = vpop.f32.mrf.mxu0
  %830 = vmatprep.mubr.bf16.mxu0 0
  %831 = vmatmul.mubr.bf16.gmra.mxu0 %v447
  %v832 = vpop.f32.mrf.mxu0
  %v833 = vadd.f32 %v164, %v832
  %v834 = vpop.f32.mrf.mxu0
  %v835 = vpop.f32.mrf.mxu0
  %v836 = vadd.f32 %v164, %v835
  %v837 = vpop.f32.mrf.mxu0
  %838 = vmatprep.mubr.bf16.mxu0 0
  %839 = vmatmul.mubr.bf16.gmra.mxu0 %v448
  %v840 = vpop.f32.mrf.mxu0
  %v841 = vadd.f32 %v164, %v840
  %v842 = vpop.f32.mrf.mxu0
  %v843 = vpop.f32.mrf.mxu0
  %v844 = vadd.f32 %v164, %v843
  %v845 = vpop.f32.mrf.mxu0
  %846 = vmatprep.mubr.bf16.mxu0 0
  %847 = vmatmul.mubr.bf16.gmra.mxu0 %v449
  %v848 = vpop.f32.mrf.mxu0
  %v849 = vadd.f32 %v164, %v848
  %v850 = vpop.f32.mrf.mxu0
  %v851 = vpop.f32.mrf.mxu0
  %v852 = vadd.f32 %v164, %v851
  %v853 = vpop.f32.mrf.mxu0
  %854 = vmatprep.mubr.bf16.mxu0 0
  %855 = vmatmul.mubr.bf16.gmra.mxu0 %v450
  %v856 = vpop.f32.mrf.mxu0
  %v857 = vadd.f32 %v164, %v856
  %v858 = vpop.f32.mrf.mxu0
  %v859 = vpop.f32.mrf.mxu0
  %v860 = vadd.f32 %v164, %v859
  %v861 = vpop.f32.mrf.mxu0
  %862 = vmatprep.mubr.bf16.mxu0 0
  %863 = vmatmul.mubr.bf16.gmra.mxu0 %v451
  %v864 = vpop.f32.mrf.mxu0
  %v865 = vadd.f32 %v164, %v864
  %v866 = vpop.f32.mrf.mxu0
  %v867 = vpop.f32.mrf.mxu0
  %v868 = vadd.f32 %v164, %v867
  %v869 = vpop.f32.mrf.mxu0
  %870 = vmatprep.mubr.bf16.mxu0 0
  %871 = vmatmul.mubr.bf16.gmra.mxu0 %v452
  %v872 = vpop.f32.mrf.mxu0
  %v873 = vadd.f32 %v164, %v872
  %v874 = vpop.f32.mrf.mxu0
  %v875 = vpop.f32.mrf.mxu0
  %v876 = vadd.f32 %v164, %v875
  %v877 = vpop.f32.mrf.mxu0
  %878 = vmatprep.mubr.bf16.mxu0 0
  %879 = vmatmul.mubr.bf16.gmra.mxu0 %v453
  %v880 = vpop.f32.mrf.mxu0
  %v881 = vadd.f32 %v164, %v880
  %v882 = vpop.f32.mrf.mxu0
  %v883 = vpop.f32.mrf.mxu0
  %v884 = vadd.f32 %v164, %v883
  %v885 = vpop.f32.mrf.mxu0
  %886 = vmatprep.mubr.bf16.mxu0 0
  %887 = vmatmul.mubr.bf16.gmra.mxu0 %v454
  %v888 = vpop.f32.mrf.mxu0
  %v889 = vadd.f32 %v164, %v888
  %v890 = vpop.f32.mrf.mxu0
  %v891 = vpop.f32.mrf.mxu0
  %v892 = vadd.f32 %v164, %v891
  %v893 = vpop.f32.mrf.mxu0
  %894 = vmatprep.mubr.bf16.mxu0 0
  %895 = vmatmul.mubr.bf16.gmra.mxu0 %v455
  %v896 = vpop.f32.mrf.mxu0
  %v897 = vadd.f32 %v164, %v896
  %v898 = vpop.f32.mrf.mxu0
  %v899 = vpop.f32.mrf.mxu0
  %v900 = vadd.f32 %v164, %v899
  %v901 = vpop.f32.mrf.mxu0
  %902 = vmatprep.mubr.bf16.mxu0 0
  %903 = vmatmul.mubr.bf16.gmra.mxu0 %v456
  %v904 = vpop.f32.mrf.mxu0
  %v905 = vadd.f32 %v164, %v904
  %v906 = vpop.f32.mrf.mxu0
  %v907 = vpop.f32.mrf.mxu0
  %v908 = vadd.f32 %v164, %v907
  %v909 = vpop.f32.mrf.mxu0
  %910 = vmatprep.mubr.bf16.mxu0 0
  %911 = vmatmul.mubr.bf16.gmra.mxu0 %v457
  %v912 = vpop.f32.mrf.mxu0
  %v913 = vadd.f32 %v164, %v912
  %v914 = vpop.f32.mrf.mxu0
  %v915 = vpop.f32.mrf.mxu0
  %v916 = vadd.f32 %v164, %v915
  %v917 = vpop.f32.mrf.mxu0
  %918 = vmatprep.mubr.bf16.mxu0 0
  %919 = vmatmul.mubr.bf16.gmra.mxu0 %v458
  %v920 = vpop.f32.mrf.mxu0
  %v921 = vadd.f32 %v164, %v920
  %v922 = vpop.f32.mrf.mxu0
  %v923 = vpop.f32.mrf.mxu0
  %v924 = vadd.f32 %v164, %v923
  %v925 = vpop.f32.mrf.mxu0
  %926 = vmatprep.mubr.bf16.mxu0 0
  %927 = vmatmul.mubr.bf16.gmra.mxu0 %v459
  %v928 = vpop.f32.mrf.mxu0
  %v929 = vadd.f32 %v164, %v928
  %v930 = vpop.f32.mrf.mxu0
  %v931 = vpop.f32.mrf.mxu0
  %v932 = vadd.f32 %v164, %v931
  %v933 = vpop.f32.mrf.mxu0
  %934 = vmatprep.mubr.bf16.mxu0 0
  %935 = vmatmul.mubr.bf16.gmra.mxu0 %v460
  %v936 = vpop.f32.mrf.mxu0
  %v937 = vadd.f32 %v164, %v936
  %v938 = vpop.f32.mrf.mxu0
  %v939 = vpop.f32.mrf.mxu0
  %v940 = vadd.f32 %v164, %v939
  %v941 = vpop.f32.mrf.mxu0
  %942 = vmatprep.mubr.bf16.mxu0 0
  %943 = vmatmul.mubr.bf16.gmra.mxu0 %v461
  %v944 = vpop.f32.mrf.mxu0
  %v945 = vadd.f32 %v164, %v944
  %v946 = vpop.f32.mrf.mxu0
  %v947 = vpop.f32.mrf.mxu0
  %v948 = vadd.f32 %v164, %v947
  %v949 = vpop.f32.mrf.mxu0
  %950 = vmatprep.mubr.bf16.mxu0 0
  %951 = vmatmul.mubr.bf16.gmra.mxu0 %v462
  %v952 = vpop.f32.mrf.mxu0
  %v953 = vadd.f32 %v164, %v952
  %v954 = vpop.f32.mrf.mxu0
  %v955 = vpop.f32.mrf.mxu0
  %v956 = vadd.f32 %v164, %v955
  %v957 = vpop.f32.mrf.mxu0
  %958 = vmatprep.mubr.bf16.mxu0 0
  %959 = vmatmul.mubr.bf16.gmra.mxu0 %v463
  %v960 = vpop.f32.mrf.mxu0
  %v961 = vadd.f32 %v164, %v960
  %v962 = vpop.f32.mrf.mxu0
  %v963 = vpop.f32.mrf.mxu0
  %v964 = vadd.f32 %v164, %v963
  %v965 = vpop.f32.mrf.mxu0
  %966 = vmatprep.mubr.bf16.mxu0 0
  %967 = vmatmul.mubr.bf16.gmra.mxu0 %v464
  %v968 = vpop.f32.mrf.mxu0
  %v969 = vadd.f32 %v164, %v968
  %v970 = vpop.f32.mrf.mxu0
  %v971 = vpop.f32.mrf.mxu0
  %v972 = vadd.f32 %v164, %v971
  %v973 = vpop.f32.mrf.mxu0
  %974 = vmatprep.mubr.bf16.mxu0 0
  %975 = vmatmul.mubr.bf16.gmra.mxu0 %v465
  %v976 = vpop.f32.mrf.mxu0
  %v977 = vadd.f32 %v164, %v976
  %v978 = vpop.f32.mrf.mxu0
  %v979 = vpop.f32.mrf.mxu0
  %v980 = vadd.f32 %v164, %v979
  %v981 = vpop.f32.mrf.mxu0
  %982 = vmatprep.mubr.bf16.mxu0 0
  %983 = vmatmul.mubr.bf16.gmra.mxu0 %v466
  %v984 = vpop.f32.mrf.mxu0
  %v985 = vadd.f32 %v164, %v984
  %v986 = vpop.f32.mrf.mxu0
  %v987 = vpop.f32.mrf.mxu0
  %v988 = vadd.f32 %v164, %v987
  %v989 = vpop.f32.mrf.mxu0
  %990 = vmatprep.mubr.bf16.mxu0 0
  %991 = vmatmul.mubr.bf16.gmra.mxu0 %v467
  %v992 = vpop.f32.mrf.mxu0
  %v993 = vadd.f32 %v164, %v992
  %v994 = vpop.f32.mrf.mxu0
  %v995 = vpop.f32.mrf.mxu0
  %v996 = vadd.f32 %v164, %v995
  %v997 = vpop.f32.mrf.mxu0
  %998 = vmatprep.mubr.bf16.mxu0 0
  %999 = vmatmul.mubr.bf16.gmra.mxu0 %v468
  %v1000 = vpop.f32.mrf.mxu0
  %v1001 = vadd.f32 %v164, %v1000
  %v1002 = vpop.f32.mrf.mxu0
  %v1003 = vpop.f32.mrf.mxu0
  %v1004 = vadd.f32 %v164, %v1003
  %v1005 = vpop.f32.mrf.mxu0
  %1006 = vmatprep.mubr.bf16.mxu0 0
  %1007 = vmatmul.mubr.bf16.gmra.mxu0 %v469
  %v1008 = vpop.f32.mrf.mxu0
  %v1009 = vadd.f32 %v164, %v1008
  %v1010 = vpop.f32.mrf.mxu0
  %v1011 = vpop.f32.mrf.mxu0
  %v1012 = vadd.f32 %v164, %v1011
  %v1013 = vpop.f32.mrf.mxu0
  %1014 = vmatprep.mubr.bf16.mxu0 0
  %1015 = vmatmul.mubr.bf16.gmra.mxu0 %v470
  %v1016 = vpop.f32.mrf.mxu0
  %v1017 = vadd.f32 %v164, %v1016
  %v1018 = vpop.f32.mrf.mxu0
  %v1019 = vpop.f32.mrf.mxu0
  %v1020 = vadd.f32 %v164, %v1019
  %v1021 = vpop.f32.mrf.mxu0
  %1022 = vmatprep.mubr.bf16.mxu0 0
  %1023 = vmatmul.mubr.bf16.gmra.mxu0 %v471
  %v1024 = vpop.f32.mrf.mxu0
  %v1025 = vadd.f32 %v164, %v1024
  %v1026 = vpop.f32.mrf.mxu0
  %v1027 = vpop.f32.mrf.mxu0
  %v1028 = vadd.f32 %v164, %v1027
  %v1029 = vpop.f32.mrf.mxu0
  %1030 = vmatprep.mubr.bf16.mxu0 0
  %1031 = vmatmul.mubr.bf16.gmra.mxu0 %v472
  %v1032 = vpop.f32.mrf.mxu0
  %v1033 = vadd.f32 %v164, %v1032
  %v1034 = vpop.f32.mrf.mxu0
  %v1035 = vpop.f32.mrf.mxu0
  %v1036 = vadd.f32 %v164, %v1035
  %v1037 = vpop.f32.mrf.mxu0
  %1038 = vmatprep.mubr.bf16.mxu0 0
  %1039 = vmatmul.mubr.bf16.gmra.mxu0 %v473
  %v1040 = vpop.f32.mrf.mxu0
  %v1041 = vadd.f32 %v164, %v1040
  %v1042 = vpop.f32.mrf.mxu0
  %v1043 = vpop.f32.mrf.mxu0
  %v1044 = vadd.f32 %v164, %v1043
  %v1045 = vpop.f32.mrf.mxu0
  %1046 = vmatprep.mubr.bf16.mxu0 0
  %1047 = vmatmul.mubr.bf16.gmra.mxu0 %v474
  %v1048 = vpop.f32.mrf.mxu0
  %v1049 = vadd.f32 %v164, %v1048
  %v1050 = vpop.f32.mrf.mxu0
  %v1051 = vpop.f32.mrf.mxu0
  %v1052 = vadd.f32 %v164, %v1051
  %v1053 = vpop.f32.mrf.mxu0
  %1054 = vmatprep.mubr.bf16.mxu0 0
  %1055 = vmatmul.mubr.bf16.gmra.mxu0 %v475
  %v1056 = vpop.f32.mrf.mxu0
  %v1057 = vadd.f32 %v164, %v1056
  %v1058 = vpop.f32.mrf.mxu0
  %v1059 = vpop.f32.mrf.mxu0
  %v1060 = vadd.f32 %v164, %v1059
  %v1061 = vpop.f32.mrf.mxu0
  %1062 = vmatprep.mubr.bf16.mxu0 0
  %1063 = vmatmul.mubr.bf16.gmra.mxu0 %v476
  %v1064 = vpop.f32.mrf.mxu0
  %v1065 = vadd.f32 %v164, %v1064
  %v1066 = vpop.f32.mrf.mxu0
  %v1067 = vpop.f32.mrf.mxu0
  %v1068 = vadd.f32 %v164, %v1067
  %v1069 = vpop.f32.mrf.mxu0
  %1070 = vmatprep.mubr.bf16.mxu0 0
  %1071 = vmatmul.mubr.bf16.gmra.mxu0 %v477
  %v1072 = vpop.f32.mrf.mxu0
  %v1073 = vadd.f32 %v164, %v1072
  %v1074 = vpop.f32.mrf.mxu0
  %v1075 = vpop.f32.mrf.mxu0
  %v1076 = vadd.f32 %v164, %v1075
  %v1077 = vpop.f32.mrf.mxu0
  %1078 = vmatprep.mubr.bf16.mxu0 0
  %1079 = vmatmul.mubr.bf16.gmra.mxu0 %v478
  %v1080 = vpop.f32.mrf.mxu0
  %v1081 = vadd.f32 %v164, %v1080
  %v1082 = vpop.f32.mrf.mxu0
  %v1083 = vpop.f32.mrf.mxu0
  %v1084 = vadd.f32 %v164, %v1083
  %v1085 = vpop.f32.mrf.mxu0
  %1086 = vmatprep.mubr.bf16.mxu0 0
  %1087 = vmatmul.mubr.bf16.gmra.mxu0 %v479
  %v1088 = vpop.f32.mrf.mxu0
  %v1089 = vadd.f32 %v164, %v1088
  %v1090 = vpop.f32.mrf.mxu0
  %v1091 = vpop.f32.mrf.mxu0
  %v1092 = vadd.f32 %v164, %v1091
  %v1093 = vpop.f32.mrf.mxu0
  %1094 = vmatprep.mubr.bf16.mxu0 0
  %1095 = vmatmul.mubr.bf16.gmra.mxu0 %v480
  %v1096 = vpop.f32.mrf.mxu0
  %v1097 = vadd.f32 %v164, %v1096
  %v1098 = vpop.f32.mrf.mxu0
  %v1099 = vpop.f32.mrf.mxu0
  %v1100 = vadd.f32 %v164, %v1099
  %v1101 = vpop.f32.mrf.mxu0
  %1102 = vmatprep.mubr.bf16.mxu0 0
  %1103 = vmatmul.mubr.bf16.gmra.mxu0 %v481
  %v1104 = vpop.f32.mrf.mxu0
  %v1105 = vadd.f32 %v164, %v1104
  %v1106 = vpop.f32.mrf.mxu0
  %v1107 = vpop.f32.mrf.mxu0
  %v1108 = vadd.f32 %v164, %v1107
  %v1109 = vpop.f32.mrf.mxu0
  %1110 = vmatprep.mubr.bf16.mxu0 0
  %1111 = vmatmul.mubr.bf16.gmra.mxu0 %v482
  %v1112 = vpop.f32.mrf.mxu0
  %v1113 = vadd.f32 %v164, %v1112
  %v1114 = vpop.f32.mrf.mxu0
  %v1115 = vpop.f32.mrf.mxu0
  %v1116 = vadd.f32 %v164, %v1115
  %v1117 = vpop.f32.mrf.mxu0
  %1118 = vmatprep.mubr.bf16.mxu0 0
  %1119 = vmatmul.mubr.bf16.gmra.mxu0 %v483
  %v1120 = vpop.f32.mrf.mxu0
  %v1121 = vadd.f32 %v164, %v1120
  %v1122 = vpop.f32.mrf.mxu0
  %v1123 = vpop.f32.mrf.mxu0
  %v1124 = vadd.f32 %v164, %v1123
  %v1125 = vpop.f32.mrf.mxu0
  %1126 = vmatprep.mubr.bf16.mxu0 0
  %1127 = vmatmul.mubr.bf16.gmra.mxu0 %v484
  %v1128 = vpop.f32.mrf.mxu0
  %v1129 = vadd.f32 %v164, %v1128
  %v1130 = vpop.f32.mrf.mxu0
  %v1131 = vpop.f32.mrf.mxu0
  %v1132 = vadd.f32 %v164, %v1131
  %v1133 = vpop.f32.mrf.mxu0
  %1134 = vmatprep.mubr.bf16.mxu0 0
  %1135 = vmatmul.mubr.bf16.gmra.mxu0 %v485
  %v1136 = vpop.f32.mrf.mxu0
  %v1137 = vadd.f32 %v164, %v1136
  %v1138 = vpop.f32.mrf.mxu0
  %v1139 = vpop.f32.mrf.mxu0
  %v1140 = vadd.f32 %v164, %v1139
  %v1141 = vpop.f32.mrf.mxu0
  %1142 = vdwg.mxu0
  %v1143 = vmax.f32 %v633, 0.0
  %v1144 = vmax.f32 %v636, 0.0
  %v1145 = vmax.f32 %v641, 0.0
  %v1146 = vmax.f32 %v644, 0.0
  %v1147 = vmax.f32 %v649, 0.0
  %v1148 = vmax.f32 %v652, 0.0
  %v1149 = vmax.f32 %v657, 0.0
  %v1150 = vmax.f32 %v660, 0.0
  %v1151 = vmax.f32 %v665, 0.0
  %v1152 = vmax.f32 %v668, 0.0
  %v1153 = vmax.f32 %v673, 0.0
  %v1154 = vmax.f32 %v676, 0.0
  %v1155 = vmax.f32 %v681, 0.0
  %v1156 = vmax.f32 %v684, 0.0
  %v1157 = vmax.f32 %v689, 0.0
  %v1158 = vmax.f32 %v692, 0.0
  %v1159 = vmax.f32 %v697, 0.0
  %v1160 = vmax.f32 %v700, 0.0
  %v1161 = vmax.f32 %v705, 0.0
  %v1162 = vmax.f32 %v708, 0.0
  %v1163 = vmax.f32 %v713, 0.0
  %v1164 = vmax.f32 %v716, 0.0
  %v1165 = vmax.f32 %v721, 0.0
  %v1166 = vmax.f32 %v724, 0.0
  %v1167 = vmax.f32 %v729, 0.0
  %v1168 = vmax.f32 %v732, 0.0
  %v1169 = vmax.f32 %v737, 0.0
  %v1170 = vmax.f32 %v740, 0.0
  %v1171 = vmax.f32 %v745, 0.0
  %v1172 = vmax.f32 %v748, 0.0
  %v1173 = vmax.f32 %v753, 0.0
  %v1174 = vmax.f32 %v756, 0.0
  %v1175 = vmax.f32 %v761, 0.0
  %v1176 = vmax.f32 %v764, 0.0
  %v1177 = vmax.f32 %v769, 0.0
  %v1178 = vmax.f32 %v772, 0.0
  %v1179 = vmax.f32 %v777, 0.0
  %v1180 = vmax.f32 %v780, 0.0
  %v1181 = vmax.f32 %v785, 0.0
  %v1182 = vmax.f32 %v788, 0.0
  %v1183 = vmax.f32 %v793, 0.0
  %v1184 = vmax.f32 %v796, 0.0
  %v1185 = vmax.f32 %v801, 0.0
  %v1186 = vmax.f32 %v804, 0.0
  %v1187 = vmax.f32 %v809, 0.0
  %v1188 = vmax.f32 %v812, 0.0
  %v1189 = vmax.f32 %v817, 0.0
  %v1190 = vmax.f32 %v820, 0.0
  %v1191 = vmax.f32 %v825, 0.0
  %v1192 = vmax.f32 %v828, 0.0
  %v1193 = vmax.f32 %v833, 0.0
  %v1194 = vmax.f32 %v836, 0.0
  %v1195 = vmax.f32 %v841, 0.0
  %v1196 = vmax.f32 %v844, 0.0
  %v1197 = vmax.f32 %v849, 0.0
  %v1198 = vmax.f32 %v852, 0.0
  %v1199 = vmax.f32 %v857, 0.0
  %v1200 = vmax.f32 %v860, 0.0
  %v1201 = vmax.f32 %v865, 0.0
  %v1202 = vmax.f32 %v868, 0.0
  %v1203 = vmax.f32 %v873, 0.0
  %v1204 = vmax.f32 %v876, 0.0
  %v1205 = vmax.f32 %v881, 0.0
  %v1206 = vmax.f32 %v884, 0.0
  %v1207 = vmax.f32 %v889, 0.0
  %v1208 = vmax.f32 %v892, 0.0
  %v1209 = vmax.f32 %v897, 0.0
  %v1210 = vmax.f32 %v900, 0.0
  %v1211 = vmax.f32 %v905, 0.0
  %v1212 = vmax.f32 %v908, 0.0
  %v1213 = vmax.f32 %v913, 0.0
  %v1214 = vmax.f32 %v916, 0.0
  %v1215 = vmax.f32 %v921, 0.0
  %v1216 = vmax.f32 %v924, 0.0
  %v1217 = vmax.f32 %v929, 0.0
  %v1218 = vmax.f32 %v932, 0.0
  %v1219 = vmax.f32 %v937, 0.0
  %v1220 = vmax.f32 %v940, 0.0
  %v1221 = vmax.f32 %v945, 0.0
  %v1222 = vmax.f32 %v948, 0.0
  %v1223 = vmax.f32 %v953, 0.0
  %v1224 = vmax.f32 %v956, 0.0
  %v1225 = vmax.f32 %v961, 0.0
  %v1226 = vmax.f32 %v964, 0.0
  %v1227 = vmax.f32 %v969, 0.0
  %v1228 = vmax.f32 %v972, 0.0
  %v1229 = vmax.f32 %v977, 0.0
  %v1230 = vmax.f32 %v980, 0.0
  %v1231 = vmax.f32 %v985, 0.0
  %v1232 = vmax.f32 %v988, 0.0
  %v1233 = vmax.f32 %v993, 0.0
  %v1234 = vmax.f32 %v996, 0.0
  %v1235 = vmax.f32 %v1001, 0.0
  %v1236 = vmax.f32 %v1004, 0.0
  %v1237 = vmax.f32 %v1009, 0.0
  %v1238 = vmax.f32 %v1012, 0.0
  %v1239 = vmax.f32 %v1017, 0.0
  %v1240 = vmax.f32 %v1020, 0.0
  %v1241 = vmax.f32 %v1025, 0.0
  %v1242 = vmax.f32 %v1028, 0.0
  %v1243 = vmax.f32 %v1033, 0.0
  %v1244 = vmax.f32 %v1036, 0.0
  %v1245 = vmax.f32 %v1041, 0.0
  %v1246 = vmax.f32 %v1044, 0.0
  %v1247 = vmax.f32 %v1049, 0.0
  %v1248 = vmax.f32 %v1052, 0.0
  %v1249 = vmax.f32 %v1057, 0.0
  %v1250 = vmax.f32 %v1060, 0.0
  %v1251 = vmax.f32 %v1065, 0.0
  %v1252 = vmax.f32 %v1068, 0.0
  %v1253 = vmax.f32 %v1073, 0.0
  %v1254 = vmax.f32 %v1076, 0.0
  %v1255 = vmax.f32 %v1081, 0.0
  %v1256 = vmax.f32 %v1084, 0.0
  %v1257 = vmax.f32 %v1089, 0.0
  %v1258 = vmax.f32 %v1092, 0.0
  %v1259 = vmax.f32 %v1097, 0.0
  %v1260 = vmax.f32 %v1100, 0.0
  %v1261 = vmax.f32 %v1105, 0.0
  %v1262 = vmax.f32 %v1108, 0.0
  %v1263 = vmax.f32 %v1113, 0.0
  %v1264 = vmax.f32 %v1116, 0.0
  %v1265 = vmax.f32 %v1121, 0.0
  %v1266 = vmax.f32 %v1124, 0.0
  %v1267 = vmax.f32 %v1129, 0.0
  %v1268 = vmax.f32 %v1132, 0.0
  %v1269 = vmax.f32 %v1137, 0.0
  %v1270 = vmax.f32 %v1140, 0.0
  %v1271 = vadd.f32 %v1143, %v1144
  %v1272 = vadd.f32 %v1271, %v1145
  %v1273 = vadd.f32 %v1272, %v1146
  %v1274 = vadd.f32 %v1273, %v1147
  %v1275 = vadd.f32 %v1274, %v1148
  %v1276 = vadd.f32 %v1275, %v1149
  %v1277 = vadd.f32 %v1276, %v1150
  %v1278 = vadd.f32 %v1277, %v1151
  %v1279 = vadd.f32 %v1278, %v1152
  %v1280 = vadd.f32 %v1279, %v1153
  %v1281 = vadd.f32 %v1280, %v1154
  %v1282 = vadd.f32 %v1281, %v1155
  %v1283 = vadd.f32 %v1282, %v1156
  %v1284 = vadd.f32 %v1283, %v1157
  %v1285 = vadd.f32 %v1284, %v1158
  %v1286 = vadd.f32 %v1285, %v1159
  %v1287 = vadd.f32 %v1286, %v1160
  %v1288 = vadd.f32 %v1287, %v1161
  %v1289 = vadd.f32 %v1288, %v1162
  %v1290 = vadd.f32 %v1289, %v1163
  %v1291 = vadd.f32 %v1290, %v1164
  %v1292 = vadd.f32 %v1291, %v1165
  %v1293 = vadd.f32 %v1292, %v1166
  %v1294 = vadd.f32 %v1293, %v1167
  %v1295 = vadd.f32 %v1294, %v1168
  %v1296 = vadd.f32 %v1295, %v1169
  %v1297 = vadd.f32 %v1296, %v1170
  %v1298 = vadd.f32 %v1297, %v1171
  %v1299 = vadd.f32 %v1298, %v1172
  %v1300 = vadd.f32 %v1299, %v1173
  %v1301 = vadd.f32 %v1300, %v1174
  %v1302 = vrot.slane %v1301, 4
  %v1303 = vadd.f32 %v1301, %v1302
  %v1304 = vrot.slane %v1303, 2
  %v1305 = vadd.f32 %v1303, %v1304
  %v1306 = vrot.slane %v1305, 1
  %v1307 = vadd.f32 %v1305, %v1306
  %v1308 = vadd.f32 %v1175, %v1176
  %v1309 = vadd.f32 %v1308, %v1177
  %v1310 = vadd.f32 %v1309, %v1178
  %v1311 = vadd.f32 %v1310, %v1179
  %v1312 = vadd.f32 %v1311, %v1180
  %v1313 = vadd.f32 %v1312, %v1181
  %v1314 = vadd.f32 %v1313, %v1182
  %v1315 = vadd.f32 %v1314, %v1183
  %v1316 = vadd.f32 %v1315, %v1184
  %v1317 = vadd.f32 %v1316, %v1185
  %v1318 = vadd.f32 %v1317, %v1186
  %v1319 = vadd.f32 %v1318, %v1187
  %v1320 = vadd.f32 %v1319, %v1188
  %v1321 = vadd.f32 %v1320, %v1189
  %v1322 = vadd.f32 %v1321, %v1190
  %v1323 = vadd.f32 %v1322, %v1191
  %v1324 = vadd.f32 %v1323, %v1192
  %v1325 = vadd.f32 %v1324, %v1193
  %v1326 = vadd.f32 %v1325, %v1194
  %v1327 = vadd.f32 %v1326, %v1195
  %v1328 = vadd.f32 %v1327, %v1196
  %v1329 = vadd.f32 %v1328, %v1197
  %v1330 = vadd.f32 %v1329, %v1198
  %v1331 = vadd.f32 %v1330, %v1199
  %v1332 = vadd.f32 %v1331, %v1200
  %v1333 = vadd.f32 %v1332, %v1201
  %v1334 = vadd.f32 %v1333, %v1202
  %v1335 = vadd.f32 %v1334, %v1203
  %v1336 = vadd.f32 %v1335, %v1204
  %v1337 = vadd.f32 %v1336, %v1205
  %v1338 = vadd.f32 %v1337, %v1206
  %v1339 = vrot.slane %v1338, 4
  %v1340 = vadd.f32 %v1338, %v1339
  %v1341 = vrot.slane %v1340, 2
  %v1342 = vadd.f32 %v1340, %v1341
  %v1343 = vrot.slane %v1342, 1
  %v1344 = vadd.f32 %v1342, %v1343
  %v1345 = vadd.f32 %v1207, %v1208
  %v1346 = vadd.f32 %v1345, %v1209
  %v1347 = vadd.f32 %v1346, %v1210
  %v1348 = vadd.f32 %v1347, %v1211
  %v1349 = vadd.f32 %v1348, %v1212
  %v1350 = vadd.f32 %v1349, %v1213
  %v1351 = vadd.f32 %v1350, %v1214
  %v1352 = vadd.f32 %v1351, %v1215
  %v1353 = vadd.f32 %v1352, %v1216
  %v1354 = vadd.f32 %v1353, %v1217
  %v1355 = vadd.f32 %v1354, %v1218
  %v1356 = vadd.f32 %v1355, %v1219
  %v1357 = vadd.f32 %v1356, %v1220
  %v1358 = vadd.f32 %v1357, %v1221
  %v1359 = vadd.f32 %v1358, %v1222
  %v1360 = vadd.f32 %v1359, %v1223
  %v1361 = vadd.f32 %v1360, %v1224
  %v1362 = vadd.f32 %v1361, %v1225
  %v1363 = vadd.f32 %v1362, %v1226
  %v1364 = vadd.f32 %v1363, %v1227
  %v1365 = vadd.f32 %v1364, %v1228
  %v1366 = vadd.f32 %v1365, %v1229
  %v1367 = vadd.f32 %v1366, %v1230
  %v1368 = vadd.f32 %v1367, %v1231
  %v1369 = vadd.f32 %v1368, %v1232
  %v1370 = vadd.f32 %v1369, %v1233
  %v1371 = vadd.f32 %v1370, %v1234
  %v1372 = vadd.f32 %v1371, %v1235
  %v1373 = vadd.f32 %v1372, %v1236
  %v1374 = vadd.f32 %v1373, %v1237
  %v1375 = vadd.f32 %v1374, %v1238
  %v1376 = vrot.slane %v1375, 4
  %v1377 = vadd.f32 %v1375, %v1376
  %v1378 = vrot.slane %v1377, 2
  %v1379 = vadd.f32 %v1377, %v1378
  %v1380 = vrot.slane %v1379, 1
  %v1381 = vadd.f32 %v1379, %v1380
  %v1382 = vadd.f32 %v1239, %v1240
  %v1383 = vadd.f32 %v1382, %v1241
  %v1384 = vadd.f32 %v1383, %v1242
  %v1385 = vadd.f32 %v1384, %v1243
  %v1386 = vadd.f32 %v1385, %v1244
  %v1387 = vadd.f32 %v1386, %v1245
  %v1388 = vadd.f32 %v1387, %v1246
  %v1389 = vadd.f32 %v1388, %v1247
  %v1390 = vadd.f32 %v1389, %v1248
  %v1391 = vadd.f32 %v1390, %v1249
  %v1392 = vadd.f32 %v1391, %v1250
  %v1393 = vadd.f32 %v1392, %v1251
  %v1394 = vadd.f32 %v1393, %v1252
  %v1395 = vadd.f32 %v1394, %v1253
  %v1396 = vadd.f32 %v1395, %v1254
  %v1397 = vadd.f32 %v1396, %v1255
  %v1398 = vadd.f32 %v1397, %v1256
  %v1399 = vadd.f32 %v1398, %v1257
  %v1400 = vadd.f32 %v1399, %v1258
  %v1401 = vadd.f32 %v1400, %v1259
  %v1402 = vadd.f32 %v1401, %v1260
  %v1403 = vadd.f32 %v1402, %v1261
  %v1404 = vadd.f32 %v1403, %v1262
  %v1405 = vadd.f32 %v1404, %v1263
  %v1406 = vadd.f32 %v1405, %v1264
  %v1407 = vadd.f32 %v1406, %v1265
  %v1408 = vadd.f32 %v1407, %v1266
  %v1409 = vadd.f32 %v1408, %v1267
  %v1410 = vadd.f32 %v1409, %v1268
  %v1411 = vadd.f32 %v1410, %v1269
  %v1412 = vadd.f32 %v1411, %v1270
  %v1413 = vrot.slane %v1412, 4
  %v1414 = vadd.f32 %v1412, %v1413
  %v1415 = vrot.slane %v1414, 2
  %v1416 = vadd.f32 %v1414, %v1415
  %v1417 = vrot.slane %v1416, 1
  %v1418 = vadd.f32 %v1416, %v1417
  %v1419 = vrcp.pop 256.0
  %v1420 = vmul.f32 %v1307, %v1419
  %v1421 = vmul.f32 %v1344, %v1419
  %v1422 = vmul.f32 %v1381, %v1419
  %v1423 = vmul.f32 %v1418, %v1419
  %vm1428 = vcmask 1041409
  %v1429 = vsel %vm1428, %v1421, %v1420
  %vm1430 = vcmask 1042434
  %v1431 = vsel %vm1430, %v1422, %v1429
  %vm1432 = vcmask 1043459
  %v1433 = vsel %vm1432, %v1423, %v1431
  %1435 = vst [vmem:[%s3] sm:$0xf] %v1433
  // Predicated region
  $region14: #{simclr_forward.2} parent=0 // pred_check
    _
  $region15: #{simclr_forward.2} parent=0 // pred_check_branch
    %1437 = sbr.rel (0) target = $region17
  $region16: #{simclr_forward.2} parent=0 // pred_region
    _
  $region17: #{simclr_forward.2} parent=0 // pred_fallthru
    _
  // Predicated region
  $region18: #{simclr_forward.2} parent=0 // pred_check
    _
  $region19: #{simclr_forward.2} parent=0 // pred_check_branch
    %1439 = sbr.rel (0) target = $region21
  $region20: #{simclr_forward.2} parent=0 // pred_region
    _
  $region21: #{simclr_forward.2} parent=0 // pred_fallthru
    _

</llo_original>
